<compile_context>
chip_gen: v6e
topology: v6e:2x2x1
jax: 0.10.0
libtpu: 0.0.40
codegen_flags: <defaults>
</compile_context>

<pallas_src>
import jax
import jax.numpy as jnp
from jax.experimental import pallas as pl
from jax.experimental.pallas import tpu as pltpu


# ----------------------------------------------------------------------------
# Static helpers (run once at init, outside the jitted forward)
# ----------------------------------------------------------------------------
def calculate_output_shape_convtranspose(input_dim, stride, padding, dilation,
                                         kernel_size, output_padding):
    return ((input_dim - 1) * stride - 2 * padding
            + dilation * (kernel_size - 1) + output_padding + 1)


def _round_up(n, m):
    return ((n + m - 1) // m) * m


# ----------------------------------------------------------------------------
# Fused encode-type Resnet1DBlock kernel (batch packed into lanes)
# ----------------------------------------------------------------------------
def _make_encode_kernel(c_in, c_out, t_len, n_b, k_size):
    nT = n_b * t_len
    pad_l = (k_size - 1) // 2          # PyTorch padding='same' (asymmetric)

    def kernel(xp_ref, w1s_ref, b1_ref, t2_ref, b2_ref, pm_ref, m1_ref,
               o_ref, y_scr):
        pm = pm_ref[...]               # (nT, nT) per-sample block-mean pooling

        def inorm_leaky(v):
            # InstanceNorm1d (affine=False, eps=1e-5, biased variance per
            # (sample, channel) over time) followed by LeakyReLU(0.4).
            # (PyTorch ignores the declared num_features when affine=False /
            # track_running_stats=False, so this matches the module.)
            mu = jnp.dot(v, pm, preferred_element_type=jnp.float32)
            d = v - mu
            var = jnp.dot(d * d, pm, preferred_element_type=jnp.float32)
            y = d * jax.lax.rsqrt(var + 1e-5)
            return jnp.where(y >= 0.0, y, 0.4 * y)

        xp = xp_ref[...]                                  # (c_in, n_b*T)
        xr = jnp.maximum(xp, 0.0)                         # ReLU before conv1a

        # conv1a step 1: contract the input channels for ALL taps in one dot.
        y_scr[...] = jnp.dot(w1s_ref[...], xr,
                             preferred_element_type=jnp.float32)  # (k*c_out, nT)

        # conv1a step 2: shift-accumulate the per-tap partials (single-vreg
        # work; the mask zeroes taps that would cross a sample boundary).
        acc = jnp.zeros((c_out, nT), jnp.float32)
        for j in range(k_size):
            d = j - pad_l                                 # static lane offset
            yj = y_scr[j * c_out:(j + 1) * c_out, :]      # (c_out, nT)
            off = d % nT
            if off == 0:
                sh = yj
            else:
                sh = jnp.concatenate([yj[:, off:], yj[:, :off]], axis=1)
            acc = acc + sh * m1_ref[j:j + 1, :]
        h1 = inorm_leaky(acc + b1_ref[...])               # (c_out, nT)

        # conv1b: precomputed block-diagonal banded-Toeplitz matmuls.
        h2 = jnp.zeros((1, nT), jnp.float32)
        for ci in range(c_out):
            h2 = h2 + jnp.dot(h1[ci:ci + 1, :], t2_ref[ci],
                              preferred_element_type=jnp.float32)
        h2 = inorm_leaky(h2 + b2_ref[...])                # (1, nT)

        # residual (1-channel result broadcast over c_in channels) + ReLU.
        o_ref[...] = jnp.maximum(xp + h2, 0.0)

    return kernel


def resnet1d_block_encode(x, w1s, b1, t2, b2, pool_m, m1):
    """Fused Resnet1DBlock(type='encode') forward.  x: (N, C_in, T) float32."""
    n_b, c_in, t_len = x.shape
    nT = n_b * t_len
    c_out = b1.shape[0]
    k_size = w1s.shape[0] // c_out
    kern = _make_encode_kernel(c_in, c_out, t_len, n_b, k_size)
    xp = jnp.transpose(x, (1, 0, 2)).reshape(c_in, nT).astype(jnp.float32)
    yp = pl.pallas_call(
        kern,
        out_shape=jax.ShapeDtypeStruct((c_in, nT), jnp.float32),
        scratch_shapes=[pltpu.VMEM((k_size * c_out, nT), jnp.float32)],
    )(xp, w1s, b1, t2, b2, pool_m, m1)
    return jnp.transpose(yp.reshape(c_in, n_b, t_len), (1, 0, 2))


def init_encode_params(key, input_dim, kernel_size):
    ks = jax.random.split(key, 4)
    s = 0.02
    return dict(
        conv1a_w=s * jax.random.normal(ks[0], (2, input_dim, kernel_size), jnp.float32),
        conv1a_b=s * jax.random.normal(ks[1], (2,), jnp.float32),
        conv1b_w=s * jax.random.normal(ks[2], (1, 2, kernel_size), jnp.float32),
        conv1b_b=s * jax.random.normal(ks[3], (1,), jnp.float32),
    )


def prepare_encode_params(p, n_b, t_len):
    """One-time layout prep: tap-stacked conv1a weights, conv1b Toeplitz,
    InstanceNorm pooling matrix and the conv1a sample-boundary mask."""
    w1 = p["conv1a_w"].astype(jnp.float32)        # (c_out, c_in, k)
    w2 = p["conv1b_w"].astype(jnp.float32)        # (1, c_out, k)
    c_out, c_in, k = w1.shape
    pad_l = (k - 1) // 2
    nT = n_b * t_len

    # conv1a: Wstack[j*c_out + co, ci] = w1[co, ci, j]
    w1s = jnp.transpose(w1, (2, 0, 1)).reshape(k * c_out, c_in)
    b1 = p["conv1a_b"].reshape(c_out, 1).astype(jnp.float32)

    # conv1b: block-diagonal (per sample) banded-Toeplitz, one per channel:
    #   out[0, t] = b2 + sum_ci (h1[ci, :] @ t2[ci])[t]
    s_idx = jnp.arange(nT)
    tap = s_idx[:, None] - s_idx[None, :] + pad_l
    same = (s_idx[:, None] // t_len) == (s_idx[None, :] // t_len)
    valid = (tap >= 0) & (tap < k) & same
    t2 = jnp.where(valid[None, :, :], w2[0][:, jnp.clip(tap, 0, k - 1)], 0.0)
    b2 = p["conv1b_b"].reshape(1, 1).astype(jnp.float32)

    # InstanceNorm per-sample block-mean pooling operator.
    pool_m = same.astype(jnp.float32) / float(t_len)

    # conv1a tap validity mask for the lane-packed layout.
    r = s_idx % t_len
    d = jnp.arange(k) - pad_l
    m1 = ((r[None, :] + d[:, None] >= 0)
          & (r[None, :] + d[:, None] < t_len)).astype(jnp.float32)   # (k, nT)

    return w1s, b1, t2, b2, pool_m, m1


# ----------------------------------------------------------------------------
# Fused decode-type Resnet1DBlock kernel (lane-padded scatter matmuls)
# ----------------------------------------------------------------------------
def _make_decode_kernel(n_pos, c_out, k_size, l_pad):
    def bn_leaky(v):
        # BatchNorm1d in training mode (batch statistics over dim 0, biased
        # variance, gamma=1 / beta=0 as at PyTorch init), then LeakyReLU(0.4).
        # TODO(synk): eval-mode running statistics are not modeled.
        mu = jnp.mean(v, axis=0, keepdims=True)
        var = jnp.mean(jnp.square(v - mu), axis=0, keepdims=True)
        y = (v - mu) * jax.lax.rsqrt(var + 1e-5)
        return jnp.where(y >= 0.0, y, 0.4 * y)

    def kernel(xt_ref, w1_ref, b1_ref, w2_ref, b2_ref, s_ref, o_ref):
        xt = xt_ref[...]                                  # (n_pos, C_in) == x.T

        def conv_t(inp, w_ref, b_ref):
            # ConvTranspose1d(stride=1, padding, dilation, output_padding) as
            # (a) one channel-contraction dot and (b) scatter dots against a
            # precomputed 0/1 scatter matrix (lane dim padded to l_pad).
            taps = jnp.dot(inp, w_ref[...],
                           preferred_element_type=jnp.float32)   # (n_pos, c_out*K)
            rows = []
            for co in range(c_out):
                r = jnp.zeros((1, l_pad), jnp.float32)
                for l in range(n_pos):
                    r = r + jnp.dot(
                        taps[l:l + 1, co * k_size:(co + 1) * k_size], s_ref[l],
                        preferred_element_type=jnp.float32)
                rows.append(r + b_ref[co:co + 1, :])
            return jnp.concatenate(rows, axis=0)          # (c_out, l_pad)

        h = bn_leaky(conv_t(jnp.maximum(xt, 0.0), w1_ref, b1_ref))   # conv1a
        # torch does z = z.transpose(0, 1) here; h (c_out, l_pad) already is the
        # (length, channels) view conv1b needs (padded channels only ever meet
        # zero rows of w2flat), so it feeds in directly.
        h = bn_leaky(conv_t(h, w2_ref, b2_ref))                      # conv1b
        # residual: z + torch.mean(x, dim=0).reshape(z.shape[0], -1); ReLU
        res = jnp.mean(xt, axis=1, keepdims=True)                    # (c_out, 1)
        o_ref[...] = jnp.maximum(h + res, 0.0)

    return kernel


def resnet1d_block_decode(x, w1flat, b1, w2flat, b2, scat, l_out):
    """Fused Resnet1DBlock(type='decode') forward.  x: (C_in, B) float32 (the
    unbatched 2-D tensor the PyTorch module actually receives)."""
    c_out = b1.shape[0]
    n_pos, k_size, l_pad = scat.shape
    kern = _make_decode_kernel(n_pos, c_out, k_size, l_pad)
    y = pl.pallas_call(
        kern,
        out_shape=jax.ShapeDtypeStruct((c_out, l_pad), jnp.float32),
    )(jnp.transpose(x).astype(jnp.float32), w1flat, b1, w2flat, b2, scat)
    return y[:, :l_out]


def init_decode_params(key, input_dim, kernel_size, batch_size):
    l_mid = calculate_output_shape_convtranspose(batch_size, 1, 95, 3, kernel_size, 1)
    ks = jax.random.split(key, 4)
    s = 0.02
    return dict(
        conv1a_w=s * jax.random.normal(ks[0], (input_dim, batch_size, kernel_size), jnp.float32),
        conv1a_b=s * jax.random.normal(ks[1], (batch_size,), jnp.float32),
        conv1b_w=s * jax.random.normal(ks[2], (l_mid, batch_size, kernel_size), jnp.float32),
        conv1b_b=s * jax.random.normal(ks[3], (batch_size,), jnp.float32),
    )


def prepare_decode_params(p, stride=1, padding=95, dilation=3, output_padding=1):
    """One-time layout prep: flattened ConvTranspose weights (zero-padded to the
    lane-padded channel count) and the 0/1 scatter matrix (lane-padded)."""
    w1 = p["conv1a_w"].astype(jnp.float32)        # (c_in, c_out, k) PyTorch layout
    w2 = p["conv1b_w"].astype(jnp.float32)        # (l_mid, c_out, k)
    c_in, c_out, k = w1.shape
    l_mid = w2.shape[0]
    n_pos = c_out                                  # convT input length == batch_size
    l_out = calculate_output_shape_convtranspose(n_pos, stride, padding,
                                                 dilation, k, output_padding)
    assert l_out == l_mid, (l_out, l_mid)
    l_pad = _round_up(l_out, 128)

    w1flat = w1.reshape(c_in, c_out * k)
    w2flat = jnp.zeros((l_pad, c_out * k), jnp.float32).at[:l_mid].set(
        w2.reshape(l_mid, c_out * k))
    b1 = p["conv1a_b"].reshape(c_out, 1).astype(jnp.float32)
    b2 = p["conv1b_b"].reshape(c_out, 1).astype(jnp.float32)

    # S[l, j, t] = 1 iff output index t receives input position l, tap j.
    t_pos = (jnp.arange(n_pos)[:, None] * stride - padding
             + dilation * jnp.arange(k)[None, :])
    scat = (t_pos[:, :, None] == jnp.arange(l_out)[None, None, :]).astype(jnp.float32)
    scat = jnp.pad(scat, ((0, 0), (0, 0), (0, l_pad - l_out)))
    return w1flat, b1, w2flat, b2, scat, l_out


# ----------------------------------------------------------------------------
# Pure-JAX references (for in-script validation only)
# ----------------------------------------------------------------------------
def _conv1d_same_ref(x, w, b):
    n, c_in, t = x.shape
    c_out, _, k = w.shape
    pad_l = (k - 1) // 2
    xp = jnp.pad(x, ((0, 0), (0, 0), (pad_l, (k - 1) - pad_l)))
    idx = jnp.arange(t)[:, None] + jnp.arange(k)[None, :]
    cols = xp[:, :, idx]                                   # (n, c_in, t, k)
    y = jnp.einsum("nctk,ock->not", cols, w,
                   precision=jax.lax.Precision.HIGHEST)
    return y + b[None, :, None]


def _inorm_leaky_ref(v):
    mu = jnp.mean(v, axis=-1, keepdims=True)
    var = jnp.mean(jnp.square(v - mu), axis=-1, keepdims=True)
    y = (v - mu) * jax.lax.rsqrt(var + 1e-5)
    return jnp.where(y >= 0.0, y, 0.4 * y)


def resnet_encode_ref(x, p):
    z = jnp.maximum(x, 0.0)
    z = _inorm_leaky_ref(_conv1d_same_ref(z, p["conv1a_w"], p["conv1a_b"]))
    z = _inorm_leaky_ref(_conv1d_same_ref(z, p["conv1b_w"], p["conv1b_b"]))
    return jnp.maximum(z + x, 0.0)


def _convT_ref(x, w, b, l_out):
    contrib = jnp.einsum("cl,cok->lok", x, w,
                         precision=jax.lax.Precision.HIGHEST)
    l_in, k = x.shape[1], w.shape[2]
    t_pos = jnp.arange(l_in)[:, None] - 95 + 3 * jnp.arange(k)[None, :]
    onehot = (t_pos[:, :, None] == jnp.arange(l_out)[None, None, :]).astype(x.dtype)
    y = jnp.einsum("lok,lkt->ot", contrib, onehot,
                   precision=jax.lax.Precision.HIGHEST)
    return y + b[:, None]


def _bnorm_leaky_ref(v):
    mu = jnp.mean(v, axis=0, keepdims=True)
    var = jnp.mean(jnp.square(v - mu), axis=0, keepdims=True)
    y = (v - mu) * jax.lax.rsqrt(var + 1e-5)
    return jnp.where(y >= 0.0, y, 0.4 * y)


def resnet_decode_ref(x, p, l_out):
    z = jnp.maximum(x, 0.0)
    z = _bnorm_leaky_ref(_convT_ref(z, p["conv1a_w"], p["conv1a_b"], l_out))
    z = z.T
    z = _bnorm_leaky_ref(_convT_ref(z, p["conv1b_w"], p["conv1b_b"], l_out))
    res = jnp.mean(x, axis=0).reshape(z.shape[0], -1)
    return jnp.maximum(z + res, 0.0)


# ----------------------------------------------------------------------------
if __name__ == "__main__":
    root = jax.random.PRNGKey(0)
    k_ep, k_ex, k_dp, k_dx = jax.random.split(root, 4)

    # ---- encode-type block: Resnet1DBlock(kernel_size=64, input_dim=64) ----
    n_b, c_in, t_len, k_sz = 2, 64, 64, 64
    enc_p = init_encode_params(k_ep, c_in, k_sz)
    enc_ops = prepare_encode_params(enc_p, n_b, t_len)     # one-time layout prep
    x_enc = jax.random.normal(k_ex, (n_b, c_in, t_len), jnp.float32)

    enc_fwd = jax.jit(resnet1d_block_encode)
    y_enc = enc_fwd(x_enc, *enc_ops)
    jax.block_until_ready(y_enc)

    y_enc_ref = resnet_encode_ref(x_enc, enc_p)
    assert y_enc.shape == (n_b, c_in, t_len), y_enc.shape
    assert bool(jnp.all(jnp.isfinite(y_enc)))
    assert float(jnp.max(jnp.abs(y_enc - y_enc_ref))) < 2e-3

    # ---- decode-type block:
    #      Resnet1DBlock(kernel_size=128, input_dim=256, batch_size=2, 'decode')
    c_in_d, k_d, b_sz = 256, 128, 2
    dec_p = init_decode_params(k_dp, c_in_d, k_d, b_sz)
    dec_w1, dec_b1, dec_w2, dec_b2, scat, l_mid = prepare_decode_params(dec_p)
    x_dec = jax.random.normal(k_dx, (c_in_d, b_sz), jnp.float32)

    dec_fwd = jax.jit(resnet1d_block_decode, static_argnums=6)
    y_dec = dec_fwd(x_dec, dec_w1, dec_b1, dec_w2, dec_b2, scat, l_mid)
    jax.block_until_ready(y_dec)

    y_dec_ref = resnet_decode_ref(x_dec, dec_p, l_mid)
    assert y_dec.shape == (b_sz, l_mid), y_dec.shape
    assert bool(jnp.all(jnp.isfinite(y_dec)))
    assert float(jnp.max(jnp.abs(y_dec - y_dec_ref))) < 2e-3

    print("KERNEL_OK")
</pallas_src>

<mosaic_0001>
module attributes {stable_mosaic.version = 11 : i64} {
  func.func @kernel(%arg0: memref<64x128xf32, #tpu.memory_space<vmem>>, %arg1: memref<128x64xf32, #tpu.memory_space<vmem>>, %arg2: memref<2x1xf32, #tpu.memory_space<vmem>>, %arg3: memref<2x128x128xf32, #tpu.memory_space<vmem>>, %arg4: memref<1x1xf32, #tpu.memory_space<vmem>>, %arg5: memref<128x128xf32, #tpu.memory_space<vmem>>, %arg6: memref<64x128xf32, #tpu.memory_space<vmem>>, %arg7: memref<64x128xf32, #tpu.memory_space<vmem>>, %arg8: memref<128x128xf32, #tpu.memory_space<vmem>>) attributes {dimension_semantics = [], scalar_prefetch = 0 : i64, scratch_operands = 1 : i64, tpu.core_type = #tpu.core_type<tc>} {
    %c0 = arith.constant 0 : index
    %c0_0 = arith.constant 0 : index
    %0 = vector.load %arg5[%c0, %c0_0] : memref<128x128xf32, #tpu.memory_space<vmem>>, vector<128x128xf32>
    %c0_1 = arith.constant 0 : index
    %c0_2 = arith.constant 0 : index
    %1 = vector.load %arg0[%c0_1, %c0_2] : memref<64x128xf32, #tpu.memory_space<vmem>>, vector<64x128xf32>
    %cst = arith.constant 0.000000e+00 : f32
    %2 = vector.broadcast %cst : f32 to vector<64x128xf32>
    %3 = arith.maximumf %1, %2 : vector<64x128xf32>
    %c0_3 = arith.constant 0 : index
    %c0_4 = arith.constant 0 : index
    %4 = vector.load %arg1[%c0_3, %c0_4] : memref<128x64xf32, #tpu.memory_space<vmem>>, vector<128x64xf32>
    %cst_5 = arith.constant dense<0.000000e+00> : vector<128x128xf32>
    %5 = tpu.matmul %4, %3, %cst_5 {dimension_numbers = #tpu.dot_dimension_numbers<[1], [0], [0], [1], [0, 0, 1, 1], [], []>} : vector<128x64xf32>, vector<64x128xf32>, vector<128x128xf32> -> vector<128x128xf32>
    %c0_6 = arith.constant 0 : index
    %c0_7 = arith.constant 0 : index
    %6 = vector.load %arg8[%c0_6, %c0_7] : memref<128x128xf32, #tpu.memory_space<vmem>>, vector<128x128xf32>
    tpu.vector_store %arg8[%c0_6, %c0_7], %5 {strides = array<i32>} : memref<128x128xf32, #tpu.memory_space<vmem>>, vector<128x128xf32>,
    %cst_8 = arith.constant 0.000000e+00 : f32
    %7 = vector.broadcast %cst_8 : f32 to vector<2x128xf32>
    %c0_9 = arith.constant 0 : index
    %c0_10 = arith.constant 0 : index
    %8 = vector.load %arg8[%c0_9, %c0_10] : memref<128x128xf32, #tpu.memory_space<vmem>>, vector<2x128xf32>
    %9 = vector.extract_strided_slice %8 {offsets = [0, 97], sizes = [2, 31], strides = [1, 1]} : vector<2x128xf32> to vector<2x31xf32>
    %10 = vector.extract_strided_slice %8 {offsets = [0, 0], sizes = [2, 97], strides = [1, 1]} : vector<2x128xf32> to vector<2x97xf32>
    %11 = tpu.concatenate %9, %10 in 1 : vector<2x31xf32>, vector<2x97xf32> -> vector<2x128xf32>
    %c0_11 = arith.constant 0 : index
    %c0_12 = arith.constant 0 : index
    %12 = vector.load %arg6[%c0_11, %c0_12] : memref<64x128xf32, #tpu.memory_space<vmem>>, vector<1x128xf32>
    %13 = vector.broadcast %12 : vector<1x128xf32> to vector<2x128xf32>
    %14 = arith.mulf %11, %13 : vector<2x128xf32>
    %15 = arith.addf %7, %14 : vector<2x128xf32>
    %c2 = arith.constant 2 : index
    %c0_13 = arith.constant 0 : index
    %16 = vector.load %arg8[%c2, %c0_13] : memref<128x128xf32, #tpu.memory_space<vmem>>, vector<2x128xf32>
    %17 = vector.extract_strided_slice %16 {offsets = [0, 98], sizes = [2, 30], strides = [1, 1]} : vector<2x128xf32> to vector<2x30xf32>
    %18 = vector.extract_strided_slice %16 {offsets = [0, 0], sizes = [2, 98], strides = [1, 1]} : vector<2x128xf32> to vector<2x98xf32>
    %19 = tpu.concatenate %17, %18 in 1 : vector<2x30xf32>, vector<2x98xf32> -> vector<2x128xf32>
    %c1 = arith.constant 1 : index
    %c0_14 = arith.constant 0 : index
    %20 = vector.load %arg6[%c1, %c0_14] : memref<64x128xf32, #tpu.memory_space<vmem>>, vector<1x128xf32>
    %21 = vector.broadcast %20 : vector<1x128xf32> to vector<2x128xf32>
    %22 = arith.mulf %19, %21 : vector<2x128xf32>
    %23 = arith.addf %15, %22 : vector<2x128xf32>
    %c4 = arith.constant 4 : index
    %c0_15 = arith.constant 0 : index
    %24 = vector.load %arg8[%c4, %c0_15] : memref<128x128xf32, #tpu.memory_space<vmem>>, vector<2x128xf32>
    %25 = vector.extract_strided_slice %24 {offsets = [0, 99], sizes = [2, 29], strides = [1, 1]} : vector<2x128xf32> to vector<2x29xf32>
    %26 = vector.extract_strided_slice %24 {offsets = [0, 0], sizes = [2, 99], strides = [1, 1]} : vector<2x128xf32> to vector<2x99xf32>
    %27 = tpu.concatenate %25, %26 in 1 : vector<2x29xf32>, vector<2x99xf32> -> vector<2x128xf32>
    %c2_16 = arith.constant 2 : index
    %c0_17 = arith.constant 0 : index
    %28 = vector.load %arg6[%c2_16, %c0_17] : memref<64x128xf32, #tpu.memory_space<vmem>>, vector<1x128xf32>
    %29 = vector.broadcast %28 : vector<1x128xf32> to vector<2x128xf32>
    %30 = arith.mulf %27, %29 : vector<2x128xf32>
    %31 = arith.addf %23, %30 : vector<2x128xf32>
    %c6 = arith.constant 6 : index
    %c0_18 = arith.constant 0 : index
    %32 = vector.load %arg8[%c6, %c0_18] : memref<128x128xf32, #tpu.memory_space<vmem>>, vector<2x128xf32>
    %33 = vector.extract_strided_slice %32 {offsets = [0, 100], sizes = [2, 28], strides = [1, 1]} : vector<2x128xf32> to vector<2x28xf32>
    %34 = vector.extract_strided_slice %32 {offsets = [0, 0], sizes = [2, 100], strides = [1, 1]} : vector<2x128xf32> to vector<2x100xf32>
    %35 = tpu.concatenate %33, %34 in 1 : vector<2x28xf32>, vector<2x100xf32> -> vector<2x128xf32>
    %c3 = arith.constant 3 : index
    %c0_19 = arith.constant 0 : index
    %36 = vector.load %arg6[%c3, %c0_19] : memref<64x128xf32, #tpu.memory_space<vmem>>, vector<1x128xf32>
    %37 = vector.broadcast %36 : vector<1x128xf32> to vector<2x128xf32>
    %38 = arith.mulf %35, %37 : vector<2x128xf32>
    %39 = arith.addf %31, %38 : vector<2x128xf32>
    %c8 = arith.constant 8 : index
    %c0_20 = arith.constant 0 : index
    %40 = vector.load %arg8[%c8, %c0_20] : memref<128x128xf32, #tpu.memory_space<vmem>>, vector<2x128xf32>
    %41 = vector.extract_strided_slice %40 {offsets = [0, 101], sizes = [2, 27], strides = [1, 1]} : vector<2x128xf32> to vector<2x27xf32>
    %42 = vector.extract_strided_slice %40 {offsets = [0, 0], sizes = [2, 101], strides = [1, 1]} : vector<2x128xf32> to vector<2x101xf32>
    %43 = tpu.concatenate %41, %42 in 1 : vector<2x27xf32>, vector<2x101xf32> -> vector<2x128xf32>
    %c4_21 = arith.constant 4 : index
    %c0_22 = arith.constant 0 : index
    %44 = vector.load %arg6[%c4_21, %c0_22] : memref<64x128xf32, #tpu.memory_space<vmem>>, vector<1x128xf32>
    %45 = vector.broadcast %44 : vector<1x128xf32> to vector<2x128xf32>
    %46 = arith.mulf %43, %45 : vector<2x128xf32>
    %47 = arith.addf %39, %46 : vector<2x128xf32>
    %c10 = arith.constant 10 : index
    %c0_23 = arith.constant 0 : index
    %48 = vector.load %arg8[%c10, %c0_23] : memref<128x128xf32, #tpu.memory_space<vmem>>, vector<2x128xf32>
    %49 = vector.extract_strided_slice %48 {offsets = [0, 102], sizes = [2, 26], strides = [1, 1]} : vector<2x128xf32> to vector<2x26xf32>
    %50 = vector.extract_strided_slice %48 {offsets = [0, 0], sizes = [2, 102], strides = [1, 1]} : vector<2x128xf32> to vector<2x102xf32>
    %51 = tpu.concatenate %49, %50 in 1 : vector<2x26xf32>, vector<2x102xf32> -> vector<2x128xf32>
    %c5 = arith.constant 5 : index
    %c0_24 = arith.constant 0 : index
    %52 = vector.load %arg6[%c5, %c0_24] : memref<64x128xf32, #tpu.memory_space<vmem>>, vector<1x128xf32>
    %53 = vector.broadcast %52 : vector<1x128xf32> to vector<2x128xf32>
    %54 = arith.mulf %51, %53 : vector<2x128xf32>
    %55 = arith.addf %47, %54 : vector<2x128xf32>
    %c12 = arith.constant 12 : index
    %c0_25 = arith.constant 0 : index
    %56 = vector.load %arg8[%c12, %c0_25] : memref<128x128xf32, #tpu.memory_space<vmem>>, vector<2x128xf32>
    %57 = vector.extract_strided_slice %56 {offsets = [0, 103], sizes = [2, 25], strides = [1, 1]} : vector<2x128xf32> to vector<2x25xf32>
    %58 = vector.extract_strided_slice %56 {offsets = [0, 0], sizes = [2, 103], strides = [1, 1]} : vector<2x128xf32> to vector<2x103xf32>
    %59 = tpu.concatenate %57, %58 in 1 : vector<2x25xf32>, vector<2x103xf32> -> vector<2x128xf32>
    %c6_26 = arith.constant 6 : index
    %c0_27 = arith.constant 0 : index
    %60 = vector.load %arg6[%c6_26, %c0_27] : memref<64x128xf32, #tpu.memory_space<vmem>>, vector<1x128xf32>
    %61 = vector.broadcast %60 : vector<1x128xf32> to vector<2x128xf32>
    %62 = arith.mulf %59, %61 : vector<2x128xf32>
    %63 = arith.addf %55, %62 : vector<2x128xf32>
    %c14 = arith.constant 14 : index
    %c0_28 = arith.constant 0 : index
    %64 = vector.load %arg8[%c14, %c0_28] : memref<128x128xf32, #tpu.memory_space<vmem>>, vector<2x128xf32>
    %65 = vector.extract_strided_slice %64 {offsets = [0, 104], sizes = [2, 24], strides = [1, 1]} : vector<2x128xf32> to vector<2x24xf32>
    %66 = vector.extract_strided_slice %64 {offsets = [0, 0], sizes = [2, 104], strides = [1, 1]} : vector<2x128xf32> to vector<2x104xf32>
    %67 = tpu.concatenate %65, %66 in 1 : vector<2x24xf32>, vector<2x104xf32> -> vector<2x128xf32>
    %c7 = arith.constant 7 : index
    %c0_29 = arith.constant 0 : index
    %68 = vector.load %arg6[%c7, %c0_29] : memref<64x128xf32, #tpu.memory_space<vmem>>, vector<1x128xf32>
    %69 = vector.broadcast %68 : vector<1x128xf32> to vector<2x128xf32>
    %70 = arith.mulf %67, %69 : vector<2x128xf32>
    %71 = arith.addf %63, %70 : vector<2x128xf32>
    %c16 = arith.constant 16 : index
    %c0_30 = arith.constant 0 : index
    %72 = vector.load %arg8[%c16, %c0_30] : memref<128x128xf32, #tpu.memory_space<vmem>>, vector<2x128xf32>
    %73 = vector.extract_strided_slice %72 {offsets = [0, 105], sizes = [2, 23], strides = [1, 1]} : vector<2x128xf32> to vector<2x23xf32>
    %74 = vector.extract_strided_slice %72 {offsets = [0, 0], sizes = [2, 105], strides = [1, 1]} : vector<2x128xf32> to vector<2x105xf32>
    %75 = tpu.concatenate %73, %74 in 1 : vector<2x23xf32>, vector<2x105xf32> -> vector<2x128xf32>
    %c8_31 = arith.constant 8 : index
    %c0_32 = arith.constant 0 : index
    %76 = vector.load %arg6[%c8_31, %c0_32] : memref<64x128xf32, #tpu.memory_space<vmem>>, vector<1x128xf32>
    %77 = vector.broadcast %76 : vector<1x128xf32> to vector<2x128xf32>
    %78 = arith.mulf %75, %77 : vector<2x128xf32>
    %79 = arith.addf %71, %78 : vector<2x128xf32>
    %c18 = arith.constant 18 : index
    %c0_33 = arith.constant 0 : index
    %80 = vector.load %arg8[%c18, %c0_33] : memref<128x128xf32, #tpu.memory_space<vmem>>, vector<2x128xf32>
    %81 = vector.extract_strided_slice %80 {offsets = [0, 106], sizes = [2, 22], strides = [1, 1]} : vector<2x128xf32> to vector<2x22xf32>
    %82 = vector.extract_strided_slice %80 {offsets = [0, 0], sizes = [2, 106], strides = [1, 1]} : vector<2x128xf32> to vector<2x106xf32>
    %83 = tpu.concatenate %81, %82 in 1 : vector<2x22xf32>, vector<2x106xf32> -> vector<2x128xf32>
    %c9 = arith.constant 9 : index
    %c0_34 = arith.constant 0 : index
    %84 = vector.load %arg6[%c9, %c0_34] : memref<64x128xf32, #tpu.memory_space<vmem>>, vector<1x128xf32>
    %85 = vector.broadcast %84 : vector<1x128xf32> to vector<2x128xf32>
    %86 = arith.mulf %83, %85 : vector<2x128xf32>
    %87 = arith.addf %79, %86 : vector<2x128xf32>
    %c20 = arith.constant 20 : index
    %c0_35 = arith.constant 0 : index
    %88 = vector.load %arg8[%c20, %c0_35] : memref<128x128xf32, #tpu.memory_space<vmem>>, vector<2x128xf32>
    %89 = vector.extract_strided_slice %88 {offsets = [0, 107], sizes = [2, 21], strides = [1, 1]} : vector<2x128xf32> to vector<2x21xf32>
    %90 = vector.extract_strided_slice %88 {offsets = [0, 0], sizes = [2, 107], strides = [1, 1]} : vector<2x128xf32> to vector<2x107xf32>
    %91 = tpu.concatenate %89, %90 in 1 : vector<2x21xf32>, vector<2x107xf32> -> vector<2x128xf32>
    %c10_36 = arith.constant 10 : index
    %c0_37 = arith.constant 0 : index
    %92 = vector.load %arg6[%c10_36, %c0_37] : memref<64x128xf32, #tpu.memory_space<vmem>>, vector<1x128xf32>
    %93 = vector.broadcast %92 : vector<1x128xf32> to vector<2x128xf32>
    %94 = arith.mulf %91, %93 : vector<2x128xf32>
    %95 = arith.addf %87, %94 : vector<2x128xf32>
    %c22 = arith.constant 22 : index
    %c0_38 = arith.constant 0 : index
    %96 = vector.load %arg8[%c22, %c0_38] : memref<128x128xf32, #tpu.memory_space<vmem>>, vector<2x128xf32>
    %97 = vector.extract_strided_slice %96 {offsets = [0, 108], sizes = [2, 20], strides = [1, 1]} : vector<2x128xf32> to vector<2x20xf32>
    %98 = vector.extract_strided_slice %96 {offsets = [0, 0], sizes = [2, 108], strides = [1, 1]} : vector<2x128xf32> to vector<2x108xf32>
    %99 = tpu.concatenate %97, %98 in 1 : vector<2x20xf32>, vector<2x108xf32> -> vector<2x128xf32>
    %c11 = arith.constant 11 : index
    %c0_39 = arith.constant 0 : index
    %100 = vector.load %arg6[%c11, %c0_39] : memref<64x128xf32, #tpu.memory_space<vmem>>, vector<1x128xf32>
    %101 = vector.broadcast %100 : vector<1x128xf32> to vector<2x128xf32>
    %102 = arith.mulf %99, %101 : vector<2x128xf32>
    %103 = arith.addf %95, %102 : vector<2x128xf32>
    %c24 = arith.constant 24 : index
    %c0_40 = arith.constant 0 : index
    %104 = vector.load %arg8[%c24, %c0_40] : memref<128x128xf32, #tpu.memory_space<vmem>>, vector<2x128xf32>
    %105 = vector.extract_strided_slice %104 {offsets = [0, 109], sizes = [2, 19], strides = [1, 1]} : vector<2x128xf32> to vector<2x19xf32>
    %106 = vector.extract_strided_slice %104 {offsets = [0, 0], sizes = [2, 109], strides = [1, 1]} : vector<2x128xf32> to vector<2x109xf32>
    %107 = tpu.concatenate %105, %106 in 1 : vector<2x19xf32>, vector<2x109xf32> -> vector<2x128xf32>
    %c12_41 = arith.constant 12 : index
    %c0_42 = arith.constant 0 : index
    %108 = vector.load %arg6[%c12_41, %c0_42] : memref<64x128xf32, #tpu.memory_space<vmem>>, vector<1x128xf32>
    %109 = vector.broadcast %108 : vector<1x128xf32> to vector<2x128xf32>
    %110 = arith.mulf %107, %109 : vector<2x128xf32>
    %111 = arith.addf %103, %110 : vector<2x128xf32>
    %c26 = arith.constant 26 : index
    %c0_43 = arith.constant 0 : index
    %112 = vector.load %arg8[%c26, %c0_43] : memref<128x128xf32, #tpu.memory_space<vmem>>, vector<2x128xf32>
    %113 = vector.extract_strided_slice %112 {offsets = [0, 110], sizes = [2, 18], strides = [1, 1]} : vector<2x128xf32> to vector<2x18xf32>
    %114 = vector.extract_strided_slice %112 {offsets = [0, 0], sizes = [2, 110], strides = [1, 1]} : vector<2x128xf32> to vector<2x110xf32>
    %115 = tpu.concatenate %113, %114 in 1 : vector<2x18xf32>, vector<2x110xf32> -> vector<2x128xf32>
    %c13 = arith.constant 13 : index
    %c0_44 = arith.constant 0 : index
    %116 = vector.load %arg6[%c13, %c0_44] : memref<64x128xf32, #tpu.memory_space<vmem>>, vector<1x128xf32>
    %117 = vector.broadcast %116 : vector<1x128xf32> to vector<2x128xf32>
    %118 = arith.mulf %115, %117 : vector<2x128xf32>
    %119 = arith.addf %111, %118 : vector<2x128xf32>
    %c28 = arith.constant 28 : index
    %c0_45 = arith.constant 0 : index
    %120 = vector.load %arg8[%c28, %c0_45] : memref<128x128xf32, #tpu.memory_space<vmem>>, vector<2x128xf32>
    %121 = vector.extract_strided_slice %120 {offsets = [0, 111], sizes = [2, 17], strides = [1, 1]} : vector<2x128xf32> to vector<2x17xf32>
    %122 = vector.extract_strided_slice %120 {offsets = [0, 0], sizes = [2, 111], strides = [1, 1]} : vector<2x128xf32> to vector<2x111xf32>
    %123 = tpu.concatenate %121, %122 in 1 : vector<2x17xf32>, vector<2x111xf32> -> vector<2x128xf32>
    %c14_46 = arith.constant 14 : index
    %c0_47 = arith.constant 0 : index
    %124 = vector.load %arg6[%c14_46, %c0_47] : memref<64x128xf32, #tpu.memory_space<vmem>>, vector<1x128xf32>
    %125 = vector.broadcast %124 : vector<1x128xf32> to vector<2x128xf32>
    %126 = arith.mulf %123, %125 : vector<2x128xf32>
    %127 = arith.addf %119, %126 : vector<2x128xf32>
    %c30 = arith.constant 30 : index
    %c0_48 = arith.constant 0 : index
    %128 = vector.load %arg8[%c30, %c0_48] : memref<128x128xf32, #tpu.memory_space<vmem>>, vector<2x128xf32>
    %129 = vector.extract_strided_slice %128 {offsets = [0, 112], sizes = [2, 16], strides = [1, 1]} : vector<2x128xf32> to vector<2x16xf32>
    %130 = vector.extract_strided_slice %128 {offsets = [0, 0], sizes = [2, 112], strides = [1, 1]} : vector<2x128xf32> to vector<2x112xf32>
    %131 = tpu.concatenate %129, %130 in 1 : vector<2x16xf32>, vector<2x112xf32> -> vector<2x128xf32>
    %c15 = arith.constant 15 : index
    %c0_49 = arith.constant 0 : index
    %132 = vector.load %arg6[%c15, %c0_49] : memref<64x128xf32, #tpu.memory_space<vmem>>, vector<1x128xf32>
    %133 = vector.broadcast %132 : vector<1x128xf32> to vector<2x128xf32>
    %134 = arith.mulf %131, %133 : vector<2x128xf32>
    %135 = arith.addf %127, %134 : vector<2x128xf32>
    %c32 = arith.constant 32 : index
    %c0_50 = arith.constant 0 : index
    %136 = vector.load %arg8[%c32, %c0_50] : memref<128x128xf32, #tpu.memory_space<vmem>>, vector<2x128xf32>
    %137 = vector.extract_strided_slice %136 {offsets = [0, 113], sizes = [2, 15], strides = [1, 1]} : vector<2x128xf32> to vector<2x15xf32>
    %138 = vector.extract_strided_slice %136 {offsets = [0, 0], sizes = [2, 113], strides = [1, 1]} : vector<2x128xf32> to vector<2x113xf32>
    %139 = tpu.concatenate %137, %138 in 1 : vector<2x15xf32>, vector<2x113xf32> -> vector<2x128xf32>
    %c16_51 = arith.constant 16 : index
    %c0_52 = arith.constant 0 : index
    %140 = vector.load %arg6[%c16_51, %c0_52] : memref<64x128xf32, #tpu.memory_space<vmem>>, vector<1x128xf32>
    %141 = vector.broadcast %140 : vector<1x128xf32> to vector<2x128xf32>
    %142 = arith.mulf %139, %141 : vector<2x128xf32>
    %143 = arith.addf %135, %142 : vector<2x128xf32>
    %c34 = arith.constant 34 : index
    %c0_53 = arith.constant 0 : index
    %144 = vector.load %arg8[%c34, %c0_53] : memref<128x128xf32, #tpu.memory_space<vmem>>, vector<2x128xf32>
    %145 = vector.extract_strided_slice %144 {offsets = [0, 114], sizes = [2, 14], strides = [1, 1]} : vector<2x128xf32> to vector<2x14xf32>
    %146 = vector.extract_strided_slice %144 {offsets = [0, 0], sizes = [2, 114], strides = [1, 1]} : vector<2x128xf32> to vector<2x114xf32>
    %147 = tpu.concatenate %145, %146 in 1 : vector<2x14xf32>, vector<2x114xf32> -> vector<2x128xf32>
    %c17 = arith.constant 17 : index
    %c0_54 = arith.constant 0 : index
    %148 = vector.load %arg6[%c17, %c0_54] : memref<64x128xf32, #tpu.memory_space<vmem>>, vector<1x128xf32>
    %149 = vector.broadcast %148 : vector<1x128xf32> to vector<2x128xf32>
    %150 = arith.mulf %147, %149 : vector<2x128xf32>
    %151 = arith.addf %143, %150 : vector<2x128xf32>
    %c36 = arith.constant 36 : index
    %c0_55 = arith.constant 0 : index
    %152 = vector.load %arg8[%c36, %c0_55] : memref<128x128xf32, #tpu.memory_space<vmem>>, vector<2x128xf32>
    %153 = vector.extract_strided_slice %152 {offsets = [0, 115], sizes = [2, 13], strides = [1, 1]} : vector<2x128xf32> to vector<2x13xf32>
    %154 = vector.extract_strided_slice %152 {offsets = [0, 0], sizes = [2, 115], strides = [1, 1]} : vector<2x128xf32> to vector<2x115xf32>
    %155 = tpu.concatenate %153, %154 in 1 : vector<2x13xf32>, vector<2x115xf32> -> vector<2x128xf32>
    %c18_56 = arith.constant 18 : index
    %c0_57 = arith.constant 0 : index
    %156 = vector.load %arg6[%c18_56, %c0_57] : memref<64x128xf32, #tpu.memory_space<vmem>>, vector<1x128xf32>
    %157 = vector.broadcast %156 : vector<1x128xf32> to vector<2x128xf32>
    %158 = arith.mulf %155, %157 : vector<2x128xf32>
    %159 = arith.addf %151, %158 : vector<2x128xf32>
    %c38 = arith.constant 38 : index
    %c0_58 = arith.constant 0 : index
    %160 = vector.load %arg8[%c38, %c0_58] : memref<128x128xf32, #tpu.memory_space<vmem>>, vector<2x128xf32>
    %161 = vector.extract_strided_slice %160 {offsets = [0, 116], sizes = [2, 12], strides = [1, 1]} : vector<2x128xf32> to vector<2x12xf32>
    %162 = vector.extract_strided_slice %160 {offsets = [0, 0], sizes = [2, 116], strides = [1, 1]} : vector<2x128xf32> to vector<2x116xf32>
    %163 = tpu.concatenate %161, %162 in 1 : vector<2x12xf32>, vector<2x116xf32> -> vector<2x128xf32>
    %c19 = arith.constant 19 : index
    %c0_59 = arith.constant 0 : index
    %164 = vector.load %arg6[%c19, %c0_59] : memref<64x128xf32, #tpu.memory_space<vmem>>, vector<1x128xf32>
    %165 = vector.broadcast %164 : vector<1x128xf32> to vector<2x128xf32>
    %166 = arith.mulf %163, %165 : vector<2x128xf32>
    %167 = arith.addf %159, %166 : vector<2x128xf32>
    %c40 = arith.constant 40 : index
    %c0_60 = arith.constant 0 : index
    %168 = vector.load %arg8[%c40, %c0_60] : memref<128x128xf32, #tpu.memory_space<vmem>>, vector<2x128xf32>
    %169 = vector.extract_strided_slice %168 {offsets = [0, 117], sizes = [2, 11], strides = [1, 1]} : vector<2x128xf32> to vector<2x11xf32>
    %170 = vector.extract_strided_slice %168 {offsets = [0, 0], sizes = [2, 117], strides = [1, 1]} : vector<2x128xf32> to vector<2x117xf32>
    %171 = tpu.concatenate %169, %170 in 1 : vector<2x11xf32>, vector<2x117xf32> -> vector<2x128xf32>
    %c20_61 = arith.constant 20 : index
    %c0_62 = arith.constant 0 : index
    %172 = vector.load %arg6[%c20_61, %c0_62] : memref<64x128xf32, #tpu.memory_space<vmem>>, vector<1x128xf32>
    %173 = vector.broadcast %172 : vector<1x128xf32> to vector<2x128xf32>
    %174 = arith.mulf %171, %173 : vector<2x128xf32>
    %175 = arith.addf %167, %174 : vector<2x128xf32>
    %c42 = arith.constant 42 : index
    %c0_63 = arith.constant 0 : index
    %176 = vector.load %arg8[%c42, %c0_63] : memref<128x128xf32, #tpu.memory_space<vmem>>, vector<2x128xf32>
    %177 = vector.extract_strided_slice %176 {offsets = [0, 118], sizes = [2, 10], strides = [1, 1]} : vector<2x128xf32> to vector<2x10xf32>
    %178 = vector.extract_strided_slice %176 {offsets = [0, 0], sizes = [2, 118], strides = [1, 1]} : vector<2x128xf32> to vector<2x118xf32>
    %179 = tpu.concatenate %177, %178 in 1 : vector<2x10xf32>, vector<2x118xf32> -> vector<2x128xf32>
    %c21 = arith.constant 21 : index
    %c0_64 = arith.constant 0 : index
    %180 = vector.load %arg6[%c21, %c0_64] : memref<64x128xf32, #tpu.memory_space<vmem>>, vector<1x128xf32>
    %181 = vector.broadcast %180 : vector<1x128xf32> to vector<2x128xf32>
    %182 = arith.mulf %179, %181 : vector<2x128xf32>
    %183 = arith.addf %175, %182 : vector<2x128xf32>
    %c44 = arith.constant 44 : index
    %c0_65 = arith.constant 0 : index
    %184 = vector.load %arg8[%c44, %c0_65] : memref<128x128xf32, #tpu.memory_space<vmem>>, vector<2x128xf32>
    %185 = vector.extract_strided_slice %184 {offsets = [0, 119], sizes = [2, 9], strides = [1, 1]} : vector<2x128xf32> to vector<2x9xf32>
    %186 = vector.extract_strided_slice %184 {offsets = [0, 0], sizes = [2, 119], strides = [1, 1]} : vector<2x128xf32> to vector<2x119xf32>
    %187 = tpu.concatenate %185, %186 in 1 : vector<2x9xf32>, vector<2x119xf32> -> vector<2x128xf32>
    %c22_66 = arith.constant 22 : index
    %c0_67 = arith.constant 0 : index
    %188 = vector.load %arg6[%c22_66, %c0_67] : memref<64x128xf32, #tpu.memory_space<vmem>>, vector<1x128xf32>
    %189 = vector.broadcast %188 : vector<1x128xf32> to vector<2x128xf32>
    %190 = arith.mulf %187, %189 : vector<2x128xf32>
    %191 = arith.addf %183, %190 : vector<2x128xf32>
    %c46 = arith.constant 46 : index
    %c0_68 = arith.constant 0 : index
    %192 = vector.load %arg8[%c46, %c0_68] : memref<128x128xf32, #tpu.memory_space<vmem>>, vector<2x128xf32>
    %193 = vector.extract_strided_slice %192 {offsets = [0, 120], sizes = [2, 8], strides = [1, 1]} : vector<2x128xf32> to vector<2x8xf32>
    %194 = vector.extract_strided_slice %192 {offsets = [0, 0], sizes = [2, 120], strides = [1, 1]} : vector<2x128xf32> to vector<2x120xf32>
    %195 = tpu.concatenate %193, %194 in 1 : vector<2x8xf32>, vector<2x120xf32> -> vector<2x128xf32>
    %c23 = arith.constant 23 : index
    %c0_69 = arith.constant 0 : index
    %196 = vector.load %arg6[%c23, %c0_69] : memref<64x128xf32, #tpu.memory_space<vmem>>, vector<1x128xf32>
    %197 = vector.broadcast %196 : vector<1x128xf32> to vector<2x128xf32>
    %198 = arith.mulf %195, %197 : vector<2x128xf32>
    %199 = arith.addf %191, %198 : vector<2x128xf32>
    %c48 = arith.constant 48 : index
    %c0_70 = arith.constant 0 : index
    %200 = vector.load %arg8[%c48, %c0_70] : memref<128x128xf32, #tpu.memory_space<vmem>>, vector<2x128xf32>
    %201 = vector.extract_strided_slice %200 {offsets = [0, 121], sizes = [2, 7], strides = [1, 1]} : vector<2x128xf32> to vector<2x7xf32>
    %202 = vector.extract_strided_slice %200 {offsets = [0, 0], sizes = [2, 121], strides = [1, 1]} : vector<2x128xf32> to vector<2x121xf32>
    %203 = tpu.concatenate %201, %202 in 1 : vector<2x7xf32>, vector<2x121xf32> -> vector<2x128xf32>
    %c24_71 = arith.constant 24 : index
    %c0_72 = arith.constant 0 : index
    %204 = vector.load %arg6[%c24_71, %c0_72] : memref<64x128xf32, #tpu.memory_space<vmem>>, vector<1x128xf32>
    %205 = vector.broadcast %204 : vector<1x128xf32> to vector<2x128xf32>
    %206 = arith.mulf %203, %205 : vector<2x128xf32>
    %207 = arith.addf %199, %206 : vector<2x128xf32>
    %c50 = arith.constant 50 : index
    %c0_73 = arith.constant 0 : index
    %208 = vector.load %arg8[%c50, %c0_73] : memref<128x128xf32, #tpu.memory_space<vmem>>, vector<2x128xf32>
    %209 = vector.extract_strided_slice %208 {offsets = [0, 122], sizes = [2, 6], strides = [1, 1]} : vector<2x128xf32> to vector<2x6xf32>
    %210 = vector.extract_strided_slice %208 {offsets = [0, 0], sizes = [2, 122], strides = [1, 1]} : vector<2x128xf32> to vector<2x122xf32>
    %211 = tpu.concatenate %209, %210 in 1 : vector<2x6xf32>, vector<2x122xf32> -> vector<2x128xf32>
    %c25 = arith.constant 25 : index
    %c0_74 = arith.constant 0 : index
    %212 = vector.load %arg6[%c25, %c0_74] : memref<64x128xf32, #tpu.memory_space<vmem>>, vector<1x128xf32>
    %213 = vector.broadcast %212 : vector<1x128xf32> to vector<2x128xf32>
    %214 = arith.mulf %211, %213 : vector<2x128xf32>
    %215 = arith.addf %207, %214 : vector<2x128xf32>
    %c52 = arith.constant 52 : index
    %c0_75 = arith.constant 0 : index
    %216 = vector.load %arg8[%c52, %c0_75] : memref<128x128xf32, #tpu.memory_space<vmem>>, vector<2x128xf32>
    %217 = vector.extract_strided_slice %216 {offsets = [0, 123], sizes = [2, 5], strides = [1, 1]} : vector<2x128xf32> to vector<2x5xf32>
    %218 = vector.extract_strided_slice %216 {offsets = [0, 0], sizes = [2, 123], strides = [1, 1]} : vector<2x128xf32> to vector<2x123xf32>
    %219 = tpu.concatenate %217, %218 in 1 : vector<2x5xf32>, vector<2x123xf32> -> vector<2x128xf32>
    %c26_76 = arith.constant 26 : index
    %c0_77 = arith.constant 0 : index
    %220 = vector.load %arg6[%c26_76, %c0_77] : memref<64x128xf32, #tpu.memory_space<vmem>>, vector<1x128xf32>
    %221 = vector.broadcast %220 : vector<1x128xf32> to vector<2x128xf32>
    %222 = arith.mulf %219, %221 : vector<2x128xf32>
    %223 = arith.addf %215, %222 : vector<2x128xf32>
    %c54 = arith.constant 54 : index
    %c0_78 = arith.constant 0 : index
    %224 = vector.load %arg8[%c54, %c0_78] : memref<128x128xf32, #tpu.memory_space<vmem>>, vector<2x128xf32>
    %225 = vector.extract_strided_slice %224 {offsets = [0, 124], sizes = [2, 4], strides = [1, 1]} : vector<2x128xf32> to vector<2x4xf32>
    %226 = vector.extract_strided_slice %224 {offsets = [0, 0], sizes = [2, 124], strides = [1, 1]} : vector<2x128xf32> to vector<2x124xf32>
    %227 = tpu.concatenate %225, %226 in 1 : vector<2x4xf32>, vector<2x124xf32> -> vector<2x128xf32>
    %c27 = arith.constant 27 : index
    %c0_79 = arith.constant 0 : index
    %228 = vector.load %arg6[%c27, %c0_79] : memref<64x128xf32, #tpu.memory_space<vmem>>, vector<1x128xf32>
    %229 = vector.broadcast %228 : vector<1x128xf32> to vector<2x128xf32>
    %230 = arith.mulf %227, %229 : vector<2x128xf32>
    %231 = arith.addf %223, %230 : vector<2x128xf32>
    %c56 = arith.constant 56 : index
    %c0_80 = arith.constant 0 : index
    %232 = vector.load %arg8[%c56, %c0_80] : memref<128x128xf32, #tpu.memory_space<vmem>>, vector<2x128xf32>
    %233 = vector.extract_strided_slice %232 {offsets = [0, 125], sizes = [2, 3], strides = [1, 1]} : vector<2x128xf32> to vector<2x3xf32>
    %234 = vector.extract_strided_slice %232 {offsets = [0, 0], sizes = [2, 125], strides = [1, 1]} : vector<2x128xf32> to vector<2x125xf32>
    %235 = tpu.concatenate %233, %234 in 1 : vector<2x3xf32>, vector<2x125xf32> -> vector<2x128xf32>
    %c28_81 = arith.constant 28 : index
    %c0_82 = arith.constant 0 : index
    %236 = vector.load %arg6[%c28_81, %c0_82] : memref<64x128xf32, #tpu.memory_space<vmem>>, vector<1x128xf32>
    %237 = vector.broadcast %236 : vector<1x128xf32> to vector<2x128xf32>
    %238 = arith.mulf %235, %237 : vector<2x128xf32>
    %239 = arith.addf %231, %238 : vector<2x128xf32>
    %c58 = arith.constant 58 : index
    %c0_83 = arith.constant 0 : index
    %240 = vector.load %arg8[%c58, %c0_83] : memref<128x128xf32, #tpu.memory_space<vmem>>, vector<2x128xf32>
    %241 = vector.extract_strided_slice %240 {offsets = [0, 126], sizes = [2, 2], strides = [1, 1]} : vector<2x128xf32> to vector<2x2xf32>
    %242 = vector.extract_strided_slice %240 {offsets = [0, 0], sizes = [2, 126], strides = [1, 1]} : vector<2x128xf32> to vector<2x126xf32>
    %243 = tpu.concatenate %241, %242 in 1 : vector<2x2xf32>, vector<2x126xf32> -> vector<2x128xf32>
    %c29 = arith.constant 29 : index
    %c0_84 = arith.constant 0 : index
    %244 = vector.load %arg6[%c29, %c0_84] : memref<64x128xf32, #tpu.memory_space<vmem>>, vector<1x128xf32>
    %245 = vector.broadcast %244 : vector<1x128xf32> to vector<2x128xf32>
    %246 = arith.mulf %243, %245 : vector<2x128xf32>
    %247 = arith.addf %239, %246 : vector<2x128xf32>
    %c60 = arith.constant 60 : index
    %c0_85 = arith.constant 0 : index
    %248 = vector.load %arg8[%c60, %c0_85] : memref<128x128xf32, #tpu.memory_space<vmem>>, vector<2x128xf32>
    %249 = vector.extract_strided_slice %248 {offsets = [0, 127], sizes = [2, 1], strides = [1, 1]} : vector<2x128xf32> to vector<2x1xf32>
    %250 = vector.extract_strided_slice %248 {offsets = [0, 0], sizes = [2, 127], strides = [1, 1]} : vector<2x128xf32> to vector<2x127xf32>
    %251 = tpu.concatenate %249, %250 in 1 : vector<2x1xf32>, vector<2x127xf32> -> vector<2x128xf32>
    %c30_86 = arith.constant 30 : index
    %c0_87 = arith.constant 0 : index
    %252 = vector.load %arg6[%c30_86, %c0_87] : memref<64x128xf32, #tpu.memory_space<vmem>>, vector<1x128xf32>
    %253 = vector.broadcast %252 : vector<1x128xf32> to vector<2x128xf32>
    %254 = arith.mulf %251, %253 : vector<2x128xf32>
    %255 = arith.addf %247, %254 : vector<2x128xf32>
    %c62 = arith.constant 62 : index
    %c0_88 = arith.constant 0 : index
    %256 = vector.load %arg8[%c62, %c0_88] : memref<128x128xf32, #tpu.memory_space<vmem>>, vector<2x128xf32>
    %c31 = arith.constant 31 : index
    %c0_89 = arith.constant 0 : index
    %257 = vector.load %arg6[%c31, %c0_89] : memref<64x128xf32, #tpu.memory_space<vmem>>, vector<1x128xf32>
    %258 = vector.broadcast %257 : vector<1x128xf32> to vector<2x128xf32>
    %259 = arith.mulf %256, %258 : vector<2x128xf32>
    %260 = arith.addf %255, %259 : vector<2x128xf32>
    %c64 = arith.constant 64 : index
    %c0_90 = arith.constant 0 : index
    %261 = vector.load %arg8[%c64, %c0_90] : memref<128x128xf32, #tpu.memory_space<vmem>>, vector<2x128xf32>
    %262 = vector.extract_strided_slice %261 {offsets = [0, 1], sizes = [2, 127], strides = [1, 1]} : vector<2x128xf32> to vector<2x127xf32>
    %263 = vector.extract_strided_slice %261 {offsets = [0, 0], sizes = [2, 1], strides = [1, 1]} : vector<2x128xf32> to vector<2x1xf32>
    %264 = tpu.concatenate %262, %263 in 1 : vector<2x127xf32>, vector<2x1xf32> -> vector<2x128xf32>
    %c32_91 = arith.constant 32 : index
    %c0_92 = arith.constant 0 : index
    %265 = vector.load %arg6[%c32_91, %c0_92] : memref<64x128xf32, #tpu.memory_space<vmem>>, vector<1x128xf32>
    %266 = vector.broadcast %265 : vector<1x128xf32> to vector<2x128xf32>
    %267 = arith.mulf %264, %266 : vector<2x128xf32>
    %268 = arith.addf %260, %267 : vector<2x128xf32>
    %c66 = arith.constant 66 : index
    %c0_93 = arith.constant 0 : index
    %269 = vector.load %arg8[%c66, %c0_93] : memref<128x128xf32, #tpu.memory_space<vmem>>, vector<2x128xf32>
    %270 = vector.extract_strided_slice %269 {offsets = [0, 2], sizes = [2, 126], strides = [1, 1]} : vector<2x128xf32> to vector<2x126xf32>
    %271 = vector.extract_strided_slice %269 {offsets = [0, 0], sizes = [2, 2], strides = [1, 1]} : vector<2x128xf32> to vector<2x2xf32>
    %272 = tpu.concatenate %270, %271 in 1 : vector<2x126xf32>, vector<2x2xf32> -> vector<2x128xf32>
    %c33 = arith.constant 33 : index
    %c0_94 = arith.constant 0 : index
    %273 = vector.load %arg6[%c33, %c0_94] : memref<64x128xf32, #tpu.memory_space<vmem>>, vector<1x128xf32>
    %274 = vector.broadcast %273 : vector<1x128xf32> to vector<2x128xf32>
    %275 = arith.mulf %272, %274 : vector<2x128xf32>
    %276 = arith.addf %268, %275 : vector<2x128xf32>
    %c68 = arith.constant 68 : index
    %c0_95 = arith.constant 0 : index
    %277 = vector.load %arg8[%c68, %c0_95] : memref<128x128xf32, #tpu.memory_space<vmem>>, vector<2x128xf32>
    %278 = vector.extract_strided_slice %277 {offsets = [0, 3], sizes = [2, 125], strides = [1, 1]} : vector<2x128xf32> to vector<2x125xf32>
    %279 = vector.extract_strided_slice %277 {offsets = [0, 0], sizes = [2, 3], strides = [1, 1]} : vector<2x128xf32> to vector<2x3xf32>
    %280 = tpu.concatenate %278, %279 in 1 : vector<2x125xf32>, vector<2x3xf32> -> vector<2x128xf32>
    %c34_96 = arith.constant 34 : index
    %c0_97 = arith.constant 0 : index
    %281 = vector.load %arg6[%c34_96, %c0_97] : memref<64x128xf32, #tpu.memory_space<vmem>>, vector<1x128xf32>
    %282 = vector.broadcast %281 : vector<1x128xf32> to vector<2x128xf32>
    %283 = arith.mulf %280, %282 : vector<2x128xf32>
    %284 = arith.addf %276, %283 : vector<2x128xf32>
    %c70 = arith.constant 70 : index
    %c0_98 = arith.constant 0 : index
    %285 = vector.load %arg8[%c70, %c0_98] : memref<128x128xf32, #tpu.memory_space<vmem>>, vector<2x128xf32>
    %286 = vector.extract_strided_slice %285 {offsets = [0, 4], sizes = [2, 124], strides = [1, 1]} : vector<2x128xf32> to vector<2x124xf32>
    %287 = vector.extract_strided_slice %285 {offsets = [0, 0], sizes = [2, 4], strides = [1, 1]} : vector<2x128xf32> to vector<2x4xf32>
    %288 = tpu.concatenate %286, %287 in 1 : vector<2x124xf32>, vector<2x4xf32> -> vector<2x128xf32>
    %c35 = arith.constant 35 : index
    %c0_99 = arith.constant 0 : index
    %289 = vector.load %arg6[%c35, %c0_99] : memref<64x128xf32, #tpu.memory_space<vmem>>, vector<1x128xf32>
    %290 = vector.broadcast %289 : vector<1x128xf32> to vector<2x128xf32>
    %291 = arith.mulf %288, %290 : vector<2x128xf32>
    %292 = arith.addf %284, %291 : vector<2x128xf32>
    %c72 = arith.constant 72 : index
    %c0_100 = arith.constant 0 : index
    %293 = vector.load %arg8[%c72, %c0_100] : memref<128x128xf32, #tpu.memory_space<vmem>>, vector<2x128xf32>
    %294 = vector.extract_strided_slice %293 {offsets = [0, 5], sizes = [2, 123], strides = [1, 1]} : vector<2x128xf32> to vector<2x123xf32>
    %295 = vector.extract_strided_slice %293 {offsets = [0, 0], sizes = [2, 5], strides = [1, 1]} : vector<2x128xf32> to vector<2x5xf32>
    %296 = tpu.concatenate %294, %295 in 1 : vector<2x123xf32>, vector<2x5xf32> -> vector<2x128xf32>
    %c36_101 = arith.constant 36 : index
    %c0_102 = arith.constant 0 : index
    %297 = vector.load %arg6[%c36_101, %c0_102] : memref<64x128xf32, #tpu.memory_space<vmem>>, vector<1x128xf32>
    %298 = vector.broadcast %297 : vector<1x128xf32> to vector<2x128xf32>
    %299 = arith.mulf %296, %298 : vector<2x128xf32>
    %300 = arith.addf %292, %299 : vector<2x128xf32>
    %c74 = arith.constant 74 : index
    %c0_103 = arith.constant 0 : index
    %301 = vector.load %arg8[%c74, %c0_103] : memref<128x128xf32, #tpu.memory_space<vmem>>, vector<2x128xf32>
    %302 = vector.extract_strided_slice %301 {offsets = [0, 6], sizes = [2, 122], strides = [1, 1]} : vector<2x128xf32> to vector<2x122xf32>
    %303 = vector.extract_strided_slice %301 {offsets = [0, 0], sizes = [2, 6], strides = [1, 1]} : vector<2x128xf32> to vector<2x6xf32>
    %304 = tpu.concatenate %302, %303 in 1 : vector<2x122xf32>, vector<2x6xf32> -> vector<2x128xf32>
    %c37 = arith.constant 37 : index
    %c0_104 = arith.constant 0 : index
    %305 = vector.load %arg6[%c37, %c0_104] : memref<64x128xf32, #tpu.memory_space<vmem>>, vector<1x128xf32>
    %306 = vector.broadcast %305 : vector<1x128xf32> to vector<2x128xf32>
    %307 = arith.mulf %304, %306 : vector<2x128xf32>
    %308 = arith.addf %300, %307 : vector<2x128xf32>
    %c76 = arith.constant 76 : index
    %c0_105 = arith.constant 0 : index
    %309 = vector.load %arg8[%c76, %c0_105] : memref<128x128xf32, #tpu.memory_space<vmem>>, vector<2x128xf32>
    %310 = vector.extract_strided_slice %309 {offsets = [0, 7], sizes = [2, 121], strides = [1, 1]} : vector<2x128xf32> to vector<2x121xf32>
    %311 = vector.extract_strided_slice %309 {offsets = [0, 0], sizes = [2, 7], strides = [1, 1]} : vector<2x128xf32> to vector<2x7xf32>
    %312 = tpu.concatenate %310, %311 in 1 : vector<2x121xf32>, vector<2x7xf32> -> vector<2x128xf32>
    %c38_106 = arith.constant 38 : index
    %c0_107 = arith.constant 0 : index
    %313 = vector.load %arg6[%c38_106, %c0_107] : memref<64x128xf32, #tpu.memory_space<vmem>>, vector<1x128xf32>
    %314 = vector.broadcast %313 : vector<1x128xf32> to vector<2x128xf32>
    %315 = arith.mulf %312, %314 : vector<2x128xf32>
    %316 = arith.addf %308, %315 : vector<2x128xf32>
    %c78 = arith.constant 78 : index
    %c0_108 = arith.constant 0 : index
    %317 = vector.load %arg8[%c78, %c0_108] : memref<128x128xf32, #tpu.memory_space<vmem>>, vector<2x128xf32>
    %318 = vector.extract_strided_slice %317 {offsets = [0, 8], sizes = [2, 120], strides = [1, 1]} : vector<2x128xf32> to vector<2x120xf32>
    %319 = vector.extract_strided_slice %317 {offsets = [0, 0], sizes = [2, 8], strides = [1, 1]} : vector<2x128xf32> to vector<2x8xf32>
    %320 = tpu.concatenate %318, %319 in 1 : vector<2x120xf32>, vector<2x8xf32> -> vector<2x128xf32>
    %c39 = arith.constant 39 : index
    %c0_109 = arith.constant 0 : index
    %321 = vector.load %arg6[%c39, %c0_109] : memref<64x128xf32, #tpu.memory_space<vmem>>, vector<1x128xf32>
    %322 = vector.broadcast %321 : vector<1x128xf32> to vector<2x128xf32>
    %323 = arith.mulf %320, %322 : vector<2x128xf32>
    %324 = arith.addf %316, %323 : vector<2x128xf32>
    %c80 = arith.constant 80 : index
    %c0_110 = arith.constant 0 : index
    %325 = vector.load %arg8[%c80, %c0_110] : memref<128x128xf32, #tpu.memory_space<vmem>>, vector<2x128xf32>
    %326 = vector.extract_strided_slice %325 {offsets = [0, 9], sizes = [2, 119], strides = [1, 1]} : vector<2x128xf32> to vector<2x119xf32>
    %327 = vector.extract_strided_slice %325 {offsets = [0, 0], sizes = [2, 9], strides = [1, 1]} : vector<2x128xf32> to vector<2x9xf32>
    %328 = tpu.concatenate %326, %327 in 1 : vector<2x119xf32>, vector<2x9xf32> -> vector<2x128xf32>
    %c40_111 = arith.constant 40 : index
    %c0_112 = arith.constant 0 : index
    %329 = vector.load %arg6[%c40_111, %c0_112] : memref<64x128xf32, #tpu.memory_space<vmem>>, vector<1x128xf32>
    %330 = vector.broadcast %329 : vector<1x128xf32> to vector<2x128xf32>
    %331 = arith.mulf %328, %330 : vector<2x128xf32>
    %332 = arith.addf %324, %331 : vector<2x128xf32>
    %c82 = arith.constant 82 : index
    %c0_113 = arith.constant 0 : index
    %333 = vector.load %arg8[%c82, %c0_113] : memref<128x128xf32, #tpu.memory_space<vmem>>, vector<2x128xf32>
    %334 = vector.extract_strided_slice %333 {offsets = [0, 10], sizes = [2, 118], strides = [1, 1]} : vector<2x128xf32> to vector<2x118xf32>
    %335 = vector.extract_strided_slice %333 {offsets = [0, 0], sizes = [2, 10], strides = [1, 1]} : vector<2x128xf32> to vector<2x10xf32>
    %336 = tpu.concatenate %334, %335 in 1 : vector<2x118xf32>, vector<2x10xf32> -> vector<2x128xf32>
    %c41 = arith.constant 41 : index
    %c0_114 = arith.constant 0 : index
    %337 = vector.load %arg6[%c41, %c0_114] : memref<64x128xf32, #tpu.memory_space<vmem>>, vector<1x128xf32>
    %338 = vector.broadcast %337 : vector<1x128xf32> to vector<2x128xf32>
    %339 = arith.mulf %336, %338 : vector<2x128xf32>
    %340 = arith.addf %332, %339 : vector<2x128xf32>
    %c84 = arith.constant 84 : index
    %c0_115 = arith.constant 0 : index
    %341 = vector.load %arg8[%c84, %c0_115] : memref<128x128xf32, #tpu.memory_space<vmem>>, vector<2x128xf32>
    %342 = vector.extract_strided_slice %341 {offsets = [0, 11], sizes = [2, 117], strides = [1, 1]} : vector<2x128xf32> to vector<2x117xf32>
    %343 = vector.extract_strided_slice %341 {offsets = [0, 0], sizes = [2, 11], strides = [1, 1]} : vector<2x128xf32> to vector<2x11xf32>
    %344 = tpu.concatenate %342, %343 in 1 : vector<2x117xf32>, vector<2x11xf32> -> vector<2x128xf32>
    %c42_116 = arith.constant 42 : index
    %c0_117 = arith.constant 0 : index
    %345 = vector.load %arg6[%c42_116, %c0_117] : memref<64x128xf32, #tpu.memory_space<vmem>>, vector<1x128xf32>
    %346 = vector.broadcast %345 : vector<1x128xf32> to vector<2x128xf32>
    %347 = arith.mulf %344, %346 : vector<2x128xf32>
    %348 = arith.addf %340, %347 : vector<2x128xf32>
    %c86 = arith.constant 86 : index
    %c0_118 = arith.constant 0 : index
    %349 = vector.load %arg8[%c86, %c0_118] : memref<128x128xf32, #tpu.memory_space<vmem>>, vector<2x128xf32>
    %350 = vector.extract_strided_slice %349 {offsets = [0, 12], sizes = [2, 116], strides = [1, 1]} : vector<2x128xf32> to vector<2x116xf32>
    %351 = vector.extract_strided_slice %349 {offsets = [0, 0], sizes = [2, 12], strides = [1, 1]} : vector<2x128xf32> to vector<2x12xf32>
    %352 = tpu.concatenate %350, %351 in 1 : vector<2x116xf32>, vector<2x12xf32> -> vector<2x128xf32>
    %c43 = arith.constant 43 : index
    %c0_119 = arith.constant 0 : index
    %353 = vector.load %arg6[%c43, %c0_119] : memref<64x128xf32, #tpu.memory_space<vmem>>, vector<1x128xf32>
    %354 = vector.broadcast %353 : vector<1x128xf32> to vector<2x128xf32>
    %355 = arith.mulf %352, %354 : vector<2x128xf32>
    %356 = arith.addf %348, %355 : vector<2x128xf32>
    %c88 = arith.constant 88 : index
    %c0_120 = arith.constant 0 : index
    %357 = vector.load %arg8[%c88, %c0_120] : memref<128x128xf32, #tpu.memory_space<vmem>>, vector<2x128xf32>
    %358 = vector.extract_strided_slice %357 {offsets = [0, 13], sizes = [2, 115], strides = [1, 1]} : vector<2x128xf32> to vector<2x115xf32>
    %359 = vector.extract_strided_slice %357 {offsets = [0, 0], sizes = [2, 13], strides = [1, 1]} : vector<2x128xf32> to vector<2x13xf32>
    %360 = tpu.concatenate %358, %359 in 1 : vector<2x115xf32>, vector<2x13xf32> -> vector<2x128xf32>
    %c44_121 = arith.constant 44 : index
    %c0_122 = arith.constant 0 : index
    %361 = vector.load %arg6[%c44_121, %c0_122] : memref<64x128xf32, #tpu.memory_space<vmem>>, vector<1x128xf32>
    %362 = vector.broadcast %361 : vector<1x128xf32> to vector<2x128xf32>
    %363 = arith.mulf %360, %362 : vector<2x128xf32>
    %364 = arith.addf %356, %363 : vector<2x128xf32>
    %c90 = arith.constant 90 : index
    %c0_123 = arith.constant 0 : index
    %365 = vector.load %arg8[%c90, %c0_123] : memref<128x128xf32, #tpu.memory_space<vmem>>, vector<2x128xf32>
    %366 = vector.extract_strided_slice %365 {offsets = [0, 14], sizes = [2, 114], strides = [1, 1]} : vector<2x128xf32> to vector<2x114xf32>
    %367 = vector.extract_strided_slice %365 {offsets = [0, 0], sizes = [2, 14], strides = [1, 1]} : vector<2x128xf32> to vector<2x14xf32>
    %368 = tpu.concatenate %366, %367 in 1 : vector<2x114xf32>, vector<2x14xf32> -> vector<2x128xf32>
    %c45 = arith.constant 45 : index
    %c0_124 = arith.constant 0 : index
    %369 = vector.load %arg6[%c45, %c0_124] : memref<64x128xf32, #tpu.memory_space<vmem>>, vector<1x128xf32>
    %370 = vector.broadcast %369 : vector<1x128xf32> to vector<2x128xf32>
    %371 = arith.mulf %368, %370 : vector<2x128xf32>
    %372 = arith.addf %364, %371 : vector<2x128xf32>
    %c92 = arith.constant 92 : index
    %c0_125 = arith.constant 0 : index
    %373 = vector.load %arg8[%c92, %c0_125] : memref<128x128xf32, #tpu.memory_space<vmem>>, vector<2x128xf32>
    %374 = vector.extract_strided_slice %373 {offsets = [0, 15], sizes = [2, 113], strides = [1, 1]} : vector<2x128xf32> to vector<2x113xf32>
    %375 = vector.extract_strided_slice %373 {offsets = [0, 0], sizes = [2, 15], strides = [1, 1]} : vector<2x128xf32> to vector<2x15xf32>
    %376 = tpu.concatenate %374, %375 in 1 : vector<2x113xf32>, vector<2x15xf32> -> vector<2x128xf32>
    %c46_126 = arith.constant 46 : index
    %c0_127 = arith.constant 0 : index
    %377 = vector.load %arg6[%c46_126, %c0_127] : memref<64x128xf32, #tpu.memory_space<vmem>>, vector<1x128xf32>
    %378 = vector.broadcast %377 : vector<1x128xf32> to vector<2x128xf32>
    %379 = arith.mulf %376, %378 : vector<2x128xf32>
    %380 = arith.addf %372, %379 : vector<2x128xf32>
    %c94 = arith.constant 94 : index
    %c0_128 = arith.constant 0 : index
    %381 = vector.load %arg8[%c94, %c0_128] : memref<128x128xf32, #tpu.memory_space<vmem>>, vector<2x128xf32>
    %382 = vector.extract_strided_slice %381 {offsets = [0, 16], sizes = [2, 112], strides = [1, 1]} : vector<2x128xf32> to vector<2x112xf32>
    %383 = vector.extract_strided_slice %381 {offsets = [0, 0], sizes = [2, 16], strides = [1, 1]} : vector<2x128xf32> to vector<2x16xf32>
    %384 = tpu.concatenate %382, %383 in 1 : vector<2x112xf32>, vector<2x16xf32> -> vector<2x128xf32>
    %c47 = arith.constant 47 : index
    %c0_129 = arith.constant 0 : index
    %385 = vector.load %arg6[%c47, %c0_129] : memref<64x128xf32, #tpu.memory_space<vmem>>, vector<1x128xf32>
    %386 = vector.broadcast %385 : vector<1x128xf32> to vector<2x128xf32>
    %387 = arith.mulf %384, %386 : vector<2x128xf32>
    %388 = arith.addf %380, %387 : vector<2x128xf32>
    %c96 = arith.constant 96 : index
    %c0_130 = arith.constant 0 : index
    %389 = vector.load %arg8[%c96, %c0_130] : memref<128x128xf32, #tpu.memory_space<vmem>>, vector<2x128xf32>
    %390 = vector.extract_strided_slice %389 {offsets = [0, 17], sizes = [2, 111], strides = [1, 1]} : vector<2x128xf32> to vector<2x111xf32>
    %391 = vector.extract_strided_slice %389 {offsets = [0, 0], sizes = [2, 17], strides = [1, 1]} : vector<2x128xf32> to vector<2x17xf32>
    %392 = tpu.concatenate %390, %391 in 1 : vector<2x111xf32>, vector<2x17xf32> -> vector<2x128xf32>
    %c48_131 = arith.constant 48 : index
    %c0_132 = arith.constant 0 : index
    %393 = vector.load %arg6[%c48_131, %c0_132] : memref<64x128xf32, #tpu.memory_space<vmem>>, vector<1x128xf32>
    %394 = vector.broadcast %393 : vector<1x128xf32> to vector<2x128xf32>
    %395 = arith.mulf %392, %394 : vector<2x128xf32>
    %396 = arith.addf %388, %395 : vector<2x128xf32>
    %c98 = arith.constant 98 : index
    %c0_133 = arith.constant 0 : index
    %397 = vector.load %arg8[%c98, %c0_133] : memref<128x128xf32, #tpu.memory_space<vmem>>, vector<2x128xf32>
    %398 = vector.extract_strided_slice %397 {offsets = [0, 18], sizes = [2, 110], strides = [1, 1]} : vector<2x128xf32> to vector<2x110xf32>
    %399 = vector.extract_strided_slice %397 {offsets = [0, 0], sizes = [2, 18], strides = [1, 1]} : vector<2x128xf32> to vector<2x18xf32>
    %400 = tpu.concatenate %398, %399 in 1 : vector<2x110xf32>, vector<2x18xf32> -> vector<2x128xf32>
    %c49 = arith.constant 49 : index
    %c0_134 = arith.constant 0 : index
    %401 = vector.load %arg6[%c49, %c0_134] : memref<64x128xf32, #tpu.memory_space<vmem>>, vector<1x128xf32>
    %402 = vector.broadcast %401 : vector<1x128xf32> to vector<2x128xf32>
    %403 = arith.mulf %400, %402 : vector<2x128xf32>
    %404 = arith.addf %396, %403 : vector<2x128xf32>
    %c100 = arith.constant 100 : index
    %c0_135 = arith.constant 0 : index
    %405 = vector.load %arg8[%c100, %c0_135] : memref<128x128xf32, #tpu.memory_space<vmem>>, vector<2x128xf32>
    %406 = vector.extract_strided_slice %405 {offsets = [0, 19], sizes = [2, 109], strides = [1, 1]} : vector<2x128xf32> to vector<2x109xf32>
    %407 = vector.extract_strided_slice %405 {offsets = [0, 0], sizes = [2, 19], strides = [1, 1]} : vector<2x128xf32> to vector<2x19xf32>
    %408 = tpu.concatenate %406, %407 in 1 : vector<2x109xf32>, vector<2x19xf32> -> vector<2x128xf32>
    %c50_136 = arith.constant 50 : index
    %c0_137 = arith.constant 0 : index
    %409 = vector.load %arg6[%c50_136, %c0_137] : memref<64x128xf32, #tpu.memory_space<vmem>>, vector<1x128xf32>
    %410 = vector.broadcast %409 : vector<1x128xf32> to vector<2x128xf32>
    %411 = arith.mulf %408, %410 : vector<2x128xf32>
    %412 = arith.addf %404, %411 : vector<2x128xf32>
    %c102 = arith.constant 102 : index
    %c0_138 = arith.constant 0 : index
    %413 = vector.load %arg8[%c102, %c0_138] : memref<128x128xf32, #tpu.memory_space<vmem>>, vector<2x128xf32>
    %414 = vector.extract_strided_slice %413 {offsets = [0, 20], sizes = [2, 108], strides = [1, 1]} : vector<2x128xf32> to vector<2x108xf32>
    %415 = vector.extract_strided_slice %413 {offsets = [0, 0], sizes = [2, 20], strides = [1, 1]} : vector<2x128xf32> to vector<2x20xf32>
    %416 = tpu.concatenate %414, %415 in 1 : vector<2x108xf32>, vector<2x20xf32> -> vector<2x128xf32>
    %c51 = arith.constant 51 : index
    %c0_139 = arith.constant 0 : index
    %417 = vector.load %arg6[%c51, %c0_139] : memref<64x128xf32, #tpu.memory_space<vmem>>, vector<1x128xf32>
    %418 = vector.broadcast %417 : vector<1x128xf32> to vector<2x128xf32>
    %419 = arith.mulf %416, %418 : vector<2x128xf32>
    %420 = arith.addf %412, %419 : vector<2x128xf32>
    %c104 = arith.constant 104 : index
    %c0_140 = arith.constant 0 : index
    %421 = vector.load %arg8[%c104, %c0_140] : memref<128x128xf32, #tpu.memory_space<vmem>>, vector<2x128xf32>
    %422 = vector.extract_strided_slice %421 {offsets = [0, 21], sizes = [2, 107], strides = [1, 1]} : vector<2x128xf32> to vector<2x107xf32>
    %423 = vector.extract_strided_slice %421 {offsets = [0, 0], sizes = [2, 21], strides = [1, 1]} : vector<2x128xf32> to vector<2x21xf32>
    %424 = tpu.concatenate %422, %423 in 1 : vector<2x107xf32>, vector<2x21xf32> -> vector<2x128xf32>
    %c52_141 = arith.constant 52 : index
    %c0_142 = arith.constant 0 : index
    %425 = vector.load %arg6[%c52_141, %c0_142] : memref<64x128xf32, #tpu.memory_space<vmem>>, vector<1x128xf32>
    %426 = vector.broadcast %425 : vector<1x128xf32> to vector<2x128xf32>
    %427 = arith.mulf %424, %426 : vector<2x128xf32>
    %428 = arith.addf %420, %427 : vector<2x128xf32>
    %c106 = arith.constant 106 : index
    %c0_143 = arith.constant 0 : index
    %429 = vector.load %arg8[%c106, %c0_143] : memref<128x128xf32, #tpu.memory_space<vmem>>, vector<2x128xf32>
    %430 = vector.extract_strided_slice %429 {offsets = [0, 22], sizes = [2, 106], strides = [1, 1]} : vector<2x128xf32> to vector<2x106xf32>
    %431 = vector.extract_strided_slice %429 {offsets = [0, 0], sizes = [2, 22], strides = [1, 1]} : vector<2x128xf32> to vector<2x22xf32>
    %432 = tpu.concatenate %430, %431 in 1 : vector<2x106xf32>, vector<2x22xf32> -> vector<2x128xf32>
    %c53 = arith.constant 53 : index
    %c0_144 = arith.constant 0 : index
    %433 = vector.load %arg6[%c53, %c0_144] : memref<64x128xf32, #tpu.memory_space<vmem>>, vector<1x128xf32>
    %434 = vector.broadcast %433 : vector<1x128xf32> to vector<2x128xf32>
    %435 = arith.mulf %432, %434 : vector<2x128xf32>
    %436 = arith.addf %428, %435 : vector<2x128xf32>
    %c108 = arith.constant 108 : index
    %c0_145 = arith.constant 0 : index
    %437 = vector.load %arg8[%c108, %c0_145] : memref<128x128xf32, #tpu.memory_space<vmem>>, vector<2x128xf32>
    %438 = vector.extract_strided_slice %437 {offsets = [0, 23], sizes = [2, 105], strides = [1, 1]} : vector<2x128xf32> to vector<2x105xf32>
    %439 = vector.extract_strided_slice %437 {offsets = [0, 0], sizes = [2, 23], strides = [1, 1]} : vector<2x128xf32> to vector<2x23xf32>
    %440 = tpu.concatenate %438, %439 in 1 : vector<2x105xf32>, vector<2x23xf32> -> vector<2x128xf32>
    %c54_146 = arith.constant 54 : index
    %c0_147 = arith.constant 0 : index
    %441 = vector.load %arg6[%c54_146, %c0_147] : memref<64x128xf32, #tpu.memory_space<vmem>>, vector<1x128xf32>
    %442 = vector.broadcast %441 : vector<1x128xf32> to vector<2x128xf32>
    %443 = arith.mulf %440, %442 : vector<2x128xf32>
    %444 = arith.addf %436, %443 : vector<2x128xf32>
    %c110 = arith.constant 110 : index
    %c0_148 = arith.constant 0 : index
    %445 = vector.load %arg8[%c110, %c0_148] : memref<128x128xf32, #tpu.memory_space<vmem>>, vector<2x128xf32>
    %446 = vector.extract_strided_slice %445 {offsets = [0, 24], sizes = [2, 104], strides = [1, 1]} : vector<2x128xf32> to vector<2x104xf32>
    %447 = vector.extract_strided_slice %445 {offsets = [0, 0], sizes = [2, 24], strides = [1, 1]} : vector<2x128xf32> to vector<2x24xf32>
    %448 = tpu.concatenate %446, %447 in 1 : vector<2x104xf32>, vector<2x24xf32> -> vector<2x128xf32>
    %c55 = arith.constant 55 : index
    %c0_149 = arith.constant 0 : index
    %449 = vector.load %arg6[%c55, %c0_149] : memref<64x128xf32, #tpu.memory_space<vmem>>, vector<1x128xf32>
    %450 = vector.broadcast %449 : vector<1x128xf32> to vector<2x128xf32>
    %451 = arith.mulf %448, %450 : vector<2x128xf32>
    %452 = arith.addf %444, %451 : vector<2x128xf32>
    %c112 = arith.constant 112 : index
    %c0_150 = arith.constant 0 : index
    %453 = vector.load %arg8[%c112, %c0_150] : memref<128x128xf32, #tpu.memory_space<vmem>>, vector<2x128xf32>
    %454 = vector.extract_strided_slice %453 {offsets = [0, 25], sizes = [2, 103], strides = [1, 1]} : vector<2x128xf32> to vector<2x103xf32>
    %455 = vector.extract_strided_slice %453 {offsets = [0, 0], sizes = [2, 25], strides = [1, 1]} : vector<2x128xf32> to vector<2x25xf32>
    %456 = tpu.concatenate %454, %455 in 1 : vector<2x103xf32>, vector<2x25xf32> -> vector<2x128xf32>
    %c56_151 = arith.constant 56 : index
    %c0_152 = arith.constant 0 : index
    %457 = vector.load %arg6[%c56_151, %c0_152] : memref<64x128xf32, #tpu.memory_space<vmem>>, vector<1x128xf32>
    %458 = vector.broadcast %457 : vector<1x128xf32> to vector<2x128xf32>
    %459 = arith.mulf %456, %458 : vector<2x128xf32>
    %460 = arith.addf %452, %459 : vector<2x128xf32>
    %c114 = arith.constant 114 : index
    %c0_153 = arith.constant 0 : index
    %461 = vector.load %arg8[%c114, %c0_153] : memref<128x128xf32, #tpu.memory_space<vmem>>, vector<2x128xf32>
    %462 = vector.extract_strided_slice %461 {offsets = [0, 26], sizes = [2, 102], strides = [1, 1]} : vector<2x128xf32> to vector<2x102xf32>
    %463 = vector.extract_strided_slice %461 {offsets = [0, 0], sizes = [2, 26], strides = [1, 1]} : vector<2x128xf32> to vector<2x26xf32>
    %464 = tpu.concatenate %462, %463 in 1 : vector<2x102xf32>, vector<2x26xf32> -> vector<2x128xf32>
    %c57 = arith.constant 57 : index
    %c0_154 = arith.constant 0 : index
    %465 = vector.load %arg6[%c57, %c0_154] : memref<64x128xf32, #tpu.memory_space<vmem>>, vector<1x128xf32>
    %466 = vector.broadcast %465 : vector<1x128xf32> to vector<2x128xf32>
    %467 = arith.mulf %464, %466 : vector<2x128xf32>
    %468 = arith.addf %460, %467 : vector<2x128xf32>
    %c116 = arith.constant 116 : index
    %c0_155 = arith.constant 0 : index
    %469 = vector.load %arg8[%c116, %c0_155] : memref<128x128xf32, #tpu.memory_space<vmem>>, vector<2x128xf32>
    %470 = vector.extract_strided_slice %469 {offsets = [0, 27], sizes = [2, 101], strides = [1, 1]} : vector<2x128xf32> to vector<2x101xf32>
    %471 = vector.extract_strided_slice %469 {offsets = [0, 0], sizes = [2, 27], strides = [1, 1]} : vector<2x128xf32> to vector<2x27xf32>
    %472 = tpu.concatenate %470, %471 in 1 : vector<2x101xf32>, vector<2x27xf32> -> vector<2x128xf32>
    %c58_156 = arith.constant 58 : index
    %c0_157 = arith.constant 0 : index
    %473 = vector.load %arg6[%c58_156, %c0_157] : memref<64x128xf32, #tpu.memory_space<vmem>>, vector<1x128xf32>
    %474 = vector.broadcast %473 : vector<1x128xf32> to vector<2x128xf32>
    %475 = arith.mulf %472, %474 : vector<2x128xf32>
    %476 = arith.addf %468, %475 : vector<2x128xf32>
    %c118 = arith.constant 118 : index
    %c0_158 = arith.constant 0 : index
    %477 = vector.load %arg8[%c118, %c0_158] : memref<128x128xf32, #tpu.memory_space<vmem>>, vector<2x128xf32>
    %478 = vector.extract_strided_slice %477 {offsets = [0, 28], sizes = [2, 100], strides = [1, 1]} : vector<2x128xf32> to vector<2x100xf32>
    %479 = vector.extract_strided_slice %477 {offsets = [0, 0], sizes = [2, 28], strides = [1, 1]} : vector<2x128xf32> to vector<2x28xf32>
    %480 = tpu.concatenate %478, %479 in 1 : vector<2x100xf32>, vector<2x28xf32> -> vector<2x128xf32>
    %c59 = arith.constant 59 : index
    %c0_159 = arith.constant 0 : index
    %481 = vector.load %arg6[%c59, %c0_159] : memref<64x128xf32, #tpu.memory_space<vmem>>, vector<1x128xf32>
    %482 = vector.broadcast %481 : vector<1x128xf32> to vector<2x128xf32>
    %483 = arith.mulf %480, %482 : vector<2x128xf32>
    %484 = arith.addf %476, %483 : vector<2x128xf32>
    %c120 = arith.constant 120 : index
    %c0_160 = arith.constant 0 : index
    %485 = vector.load %arg8[%c120, %c0_160] : memref<128x128xf32, #tpu.memory_space<vmem>>, vector<2x128xf32>
    %486 = vector.extract_strided_slice %485 {offsets = [0, 29], sizes = [2, 99], strides = [1, 1]} : vector<2x128xf32> to vector<2x99xf32>
    %487 = vector.extract_strided_slice %485 {offsets = [0, 0], sizes = [2, 29], strides = [1, 1]} : vector<2x128xf32> to vector<2x29xf32>
    %488 = tpu.concatenate %486, %487 in 1 : vector<2x99xf32>, vector<2x29xf32> -> vector<2x128xf32>
    %c60_161 = arith.constant 60 : index
    %c0_162 = arith.constant 0 : index
    %489 = vector.load %arg6[%c60_161, %c0_162] : memref<64x128xf32, #tpu.memory_space<vmem>>, vector<1x128xf32>
    %490 = vector.broadcast %489 : vector<1x128xf32> to vector<2x128xf32>
    %491 = arith.mulf %488, %490 : vector<2x128xf32>
    %492 = arith.addf %484, %491 : vector<2x128xf32>
    %c122 = arith.constant 122 : index
    %c0_163 = arith.constant 0 : index
    %493 = vector.load %arg8[%c122, %c0_163] : memref<128x128xf32, #tpu.memory_space<vmem>>, vector<2x128xf32>
    %494 = vector.extract_strided_slice %493 {offsets = [0, 30], sizes = [2, 98], strides = [1, 1]} : vector<2x128xf32> to vector<2x98xf32>
    %495 = vector.extract_strided_slice %493 {offsets = [0, 0], sizes = [2, 30], strides = [1, 1]} : vector<2x128xf32> to vector<2x30xf32>
    %496 = tpu.concatenate %494, %495 in 1 : vector<2x98xf32>, vector<2x30xf32> -> vector<2x128xf32>
    %c61 = arith.constant 61 : index
    %c0_164 = arith.constant 0 : index
    %497 = vector.load %arg6[%c61, %c0_164] : memref<64x128xf32, #tpu.memory_space<vmem>>, vector<1x128xf32>
    %498 = vector.broadcast %497 : vector<1x128xf32> to vector<2x128xf32>
    %499 = arith.mulf %496, %498 : vector<2x128xf32>
    %500 = arith.addf %492, %499 : vector<2x128xf32>
    %c124 = arith.constant 124 : index
    %c0_165 = arith.constant 0 : index
    %501 = vector.load %arg8[%c124, %c0_165] : memref<128x128xf32, #tpu.memory_space<vmem>>, vector<2x128xf32>
    %502 = vector.extract_strided_slice %501 {offsets = [0, 31], sizes = [2, 97], strides = [1, 1]} : vector<2x128xf32> to vector<2x97xf32>
    %503 = vector.extract_strided_slice %501 {offsets = [0, 0], sizes = [2, 31], strides = [1, 1]} : vector<2x128xf32> to vector<2x31xf32>
    %504 = tpu.concatenate %502, %503 in 1 : vector<2x97xf32>, vector<2x31xf32> -> vector<2x128xf32>
    %c62_166 = arith.constant 62 : index
    %c0_167 = arith.constant 0 : index
    %505 = vector.load %arg6[%c62_166, %c0_167] : memref<64x128xf32, #tpu.memory_space<vmem>>, vector<1x128xf32>
    %506 = vector.broadcast %505 : vector<1x128xf32> to vector<2x128xf32>
    %507 = arith.mulf %504, %506 : vector<2x128xf32>
    %508 = arith.addf %500, %507 : vector<2x128xf32>
    %c126 = arith.constant 126 : index
    %c0_168 = arith.constant 0 : index
    %509 = vector.load %arg8[%c126, %c0_168] : memref<128x128xf32, #tpu.memory_space<vmem>>, vector<2x128xf32>
    %510 = vector.extract_strided_slice %509 {offsets = [0, 32], sizes = [2, 96], strides = [1, 1]} : vector<2x128xf32> to vector<2x96xf32>
    %511 = vector.extract_strided_slice %509 {offsets = [0, 0], sizes = [2, 32], strides = [1, 1]} : vector<2x128xf32> to vector<2x32xf32>
    %512 = tpu.concatenate %510, %511 in 1 : vector<2x96xf32>, vector<2x32xf32> -> vector<2x128xf32>
    %c63 = arith.constant 63 : index
    %c0_169 = arith.constant 0 : index
    %513 = vector.load %arg6[%c63, %c0_169] : memref<64x128xf32, #tpu.memory_space<vmem>>, vector<1x128xf32>
    %514 = vector.broadcast %513 : vector<1x128xf32> to vector<2x128xf32>
    %515 = arith.mulf %512, %514 : vector<2x128xf32>
    %516 = arith.addf %508, %515 : vector<2x128xf32>
    %c0_170 = arith.constant 0 : index
    %c0_171 = arith.constant 0 : index
    %517 = vector.load %arg2[%c0_170, %c0_171] : memref<2x1xf32, #tpu.memory_space<vmem>>, vector<2x1xf32>
    %518 = vector.broadcast %517 : vector<2x1xf32> to vector<2x128xf32>
    %519 = arith.addf %516, %518 : vector<2x128xf32>
    %cst_172 = arith.constant dense<0.000000e+00> : vector<2x128xf32>
    %520 = tpu.matmul %519, %0, %cst_172 {dimension_numbers = #tpu.dot_dimension_numbers<[1], [0], [0], [1], [0, 0, 1, 1], [], []>} : vector<2x128xf32>, vector<128x128xf32>, vector<2x128xf32> -> vector<2x128xf32>
    %521 = arith.subf %519, %520 : vector<2x128xf32>
    %522 = arith.mulf %521, %521 : vector<2x128xf32>
    %cst_173 = arith.constant dense<0.000000e+00> : vector<2x128xf32>
    %523 = tpu.matmul %522, %0, %cst_173 {dimension_numbers = #tpu.dot_dimension_numbers<[1], [0], [0], [1], [0, 0, 1, 1], [], []>} : vector<2x128xf32>, vector<128x128xf32>, vector<2x128xf32> -> vector<2x128xf32>
    %cst_174 = arith.constant 9.99999974E-6 : f32
    %524 = vector.broadcast %cst_174 : f32 to vector<2x128xf32>
    %525 = arith.addf %523, %524 : vector<2x128xf32>
    %526 = math.rsqrt %525 : vector<2x128xf32>
    %527 = arith.mulf %521, %526 : vector<2x128xf32>
    %cst_175 = arith.constant 0.000000e+00 : f32
    %528 = vector.broadcast %cst_175 : f32 to vector<2x128xf32>
    %529 = arith.cmpf oge, %527, %528 : vector<2x128xf32>
    %cst_176 = arith.constant 4.000000e-01 : f32
    %530 = vector.broadcast %cst_176 : f32 to vector<2x128xf32>
    %531 = arith.mulf %530, %527 : vector<2x128xf32>
    %532 = arith.select %529, %527, %531 : vector<2x128xi1>, vector<2x128xf32>
    %cst_177 = arith.constant 0.000000e+00 : f32
    %533 = vector.broadcast %cst_177 : f32 to vector<1x128xf32>
    %534 = vector.extract_strided_slice %532 {offsets = [0, 0], sizes = [1, 128], strides = [1, 1]} : vector<2x128xf32> to vector<1x128xf32>
    %c0_178 = arith.constant 0 : index
    %c0_179 = arith.constant 0 : index
    %c0_180 = arith.constant 0 : index
    %535 = vector.load %arg3[%c0_178, %c0_179, %c0_180] : memref<2x128x128xf32, #tpu.memory_space<vmem>>, vector<1x128x128xf32>
    %536 = vector.shape_cast %535 : vector<1x128x128xf32> to vector<128x128xf32>
    %cst_181 = arith.constant dense<0.000000e+00> : vector<1x128xf32>
    %537 = tpu.matmul %534, %536, %cst_181 {dimension_numbers = #tpu.dot_dimension_numbers<[1], [0], [0], [1], [0, 0, 1, 1], [], []>} : vector<1x128xf32>, vector<128x128xf32>, vector<1x128xf32> -> vector<1x128xf32>
    %538 = arith.addf %533, %537 : vector<1x128xf32>
    %539 = vector.extract_strided_slice %532 {offsets = [1, 0], sizes = [1, 128], strides = [1, 1]} : vector<2x128xf32> to vector<1x128xf32>
    %c1_182 = arith.constant 1 : index
    %c0_183 = arith.constant 0 : index
    %c0_184 = arith.constant 0 : index
    %540 = vector.load %arg3[%c1_182, %c0_183, %c0_184] : memref<2x128x128xf32, #tpu.memory_space<vmem>>, vector<1x128x128xf32>
    %541 = vector.shape_cast %540 : vector<1x128x128xf32> to vector<128x128xf32>
    %cst_185 = arith.constant dense<0.000000e+00> : vector<1x128xf32>
    %542 = tpu.matmul %539, %541, %cst_185 {dimension_numbers = #tpu.dot_dimension_numbers<[1], [0], [0], [1], [0, 0, 1, 1], [], []>} : vector<1x128xf32>, vector<128x128xf32>, vector<1x128xf32> -> vector<1x128xf32>
    %543 = arith.addf %538, %542 : vector<1x128xf32>
    %c0_186 = arith.constant 0 : index
    %c0_187 = arith.constant 0 : index
    %544 = vector.load %arg4[%c0_186, %c0_187] : memref<1x1xf32, #tpu.memory_space<vmem>>, vector<1x1xf32>
    %545 = vector.broadcast %544 : vector<1x1xf32> to vector<1x128xf32>
    %546 = arith.addf %543, %545 : vector<1x128xf32>
    %cst_188 = arith.constant dense<0.000000e+00> : vector<1x128xf32>
    %547 = tpu.matmul %546, %0, %cst_188 {dimension_numbers = #tpu.dot_dimension_numbers<[1], [0], [0], [1], [0, 0, 1, 1], [], []>} : vector<1x128xf32>, vector<128x128xf32>, vector<1x128xf32> -> vector<1x128xf32>
    %548 = arith.subf %546, %547 : vector<1x128xf32>
    %549 = arith.mulf %548, %548 : vector<1x128xf32>
    %cst_189 = arith.constant dense<0.000000e+00> : vector<1x128xf32>
    %550 = tpu.matmul %549, %0, %cst_189 {dimension_numbers = #tpu.dot_dimension_numbers<[1], [0], [0], [1], [0, 0, 1, 1], [], []>} : vector<1x128xf32>, vector<128x128xf32>, vector<1x128xf32> -> vector<1x128xf32>
    %cst_190 = arith.constant 9.99999974E-6 : f32
    %551 = vector.broadcast %cst_190 : f32 to vector<1x128xf32>
    %552 = arith.addf %550, %551 : vector<1x128xf32>
    %553 = math.rsqrt %552 : vector<1x128xf32>
    %554 = arith.mulf %548, %553 : vector<1x128xf32>
    %cst_191 = arith.constant 0.000000e+00 : f32
    %555 = vector.broadcast %cst_191 : f32 to vector<1x128xf32>
    %556 = arith.cmpf oge, %554, %555 : vector<1x128xf32>
    %cst_192 = arith.constant 4.000000e-01 : f32
    %557 = vector.broadcast %cst_192 : f32 to vector<1x128xf32>
    %558 = arith.mulf %557, %554 : vector<1x128xf32>
    %559 = arith.select %556, %554, %558 : vector<1x128xi1>, vector<1x128xf32>
    %560 = vector.broadcast %559 : vector<1x128xf32> to vector<64x128xf32>
    %561 = arith.addf %1, %560 : vector<64x128xf32>
    %cst_193 = arith.constant 0.000000e+00 : f32
    %562 = vector.broadcast %cst_193 : f32 to vector<64x128xf32>
    %563 = arith.maximumf %561, %562 : vector<64x128xf32>
    %c0_194 = arith.constant 0 : index
    %c0_195 = arith.constant 0 : index
    %564 = vector.load %arg7[%c0_194, %c0_195] : memref<64x128xf32, #tpu.memory_space<vmem>>, vector<64x128xf32>
    tpu.vector_store %arg7[%c0_194, %c0_195], %563 {strides = array<i32>} : memref<64x128xf32, #tpu.memory_space<vmem>>, vector<64x128xf32>,
    return
  }
}

</mosaic_0001>

<llo_original>
// kernel: resnet1d_block_encode.1
$region0: #{resnet1d_block_encode.1}
  #allocation0 [shape = 'u32[]', space=smem, size = 0x4, offset = 0x4, fixed_abs, tag = 'smem constant byte address 0x4 - core index']
  #allocation1 [shape = 'u32[144,128]{1,0:T(1,128)}', space=vmem, size = 0x12000, scoped, tag = 'internal scratch']
  #allocation2 [shape = 'f32[128,128]{1,0:T(8,128)}', space=vmem, size = 0x10000, scoped, tag = 'scratch operand']
  #allocation3 [shape = 'f32[1,1]{1,0:T(1,128)S(1)}', space=vmem, size = 0x200, scoped, tag = 'scoped memory for resnet1d_block_encode.1']
  %s0 = inlined_call_operand.vmem [shape: f32[64,128], index: 0, kind: input, shape index: {}]
  %s1 = inlined_call_operand.vmem [shape: f32[128,64], index: 1, kind: input, shape index: {}]
  %s2 = inlined_call_operand.vmem [shape: f32[2,1], index: 2, kind: input, shape index: {}]
  %s3 = inlined_call_operand.vmem [shape: f32[2,128,128], index: 3, kind: input, shape index: {}]
  %s4 = inlined_call_operand.<no memory space> [shape: f32[1,1], index: 4, kind: input, shape index: {}]
  %s5 = inlined_call_operand.vmem [shape: f32[128,128], index: 5, kind: input, shape index: {}]
  %s6 = inlined_call_operand.vmem [shape: f32[64,128], index: 6, kind: input, shape index: {}]
  %s7 = inlined_call_operand.vmem [shape: f32[64,128], index: 7, kind: output, shape index: {}]
  %s8 = sld [smem:[#allocation0]]
  $region38: #{resnet1d_block_encode.1} parent=0
    _
  %s10 = ssub.s32 1, %s8
  %s11 = scalar_select 0, %s10, %s8
  %v12 = vstv %s4
  %13 = vst [vmem:[#allocation3] sm:$0x1] %v12
  // Predicated region
  $region2: #{resnet1d_block_encode.1} parent=0 // pred_check
    _
  $region3: #{resnet1d_block_encode.1} parent=0 // pred_check_branch
    %15 = sbr.rel (0) target = $region5
  $region4: #{resnet1d_block_encode.1} parent=0 // pred_region
    _
  $region5: #{resnet1d_block_encode.1} parent=0 // pred_fallthru
    _
  // Predicated region
  $region6: #{resnet1d_block_encode.1} parent=0 // pred_check
    _
  $region7: #{resnet1d_block_encode.1} parent=0 // pred_check_branch
    %17 = sbr.rel (0) target = $region9
  $region8: #{resnet1d_block_encode.1} parent=0 // pred_region
    _
  $region9: #{resnet1d_block_encode.1} parent=0 // pred_fallthru
    _
  // Predicated region
  $region10: #{resnet1d_block_encode.1} parent=0 // pred_check
    _
  $region11: #{resnet1d_block_encode.1} parent=0 // pred_check_branch
    %19 = sbr.rel (0) target = $region13
  $region12: #{resnet1d_block_encode.1} parent=0 // pred_region
    _
  $region13: #{resnet1d_block_encode.1} parent=0 // pred_fallthru
    _
  // Predicated region
  $region14: #{resnet1d_block_encode.1} parent=0 // pred_check
    _
  $region15: #{resnet1d_block_encode.1} parent=0 // pred_check_branch
    %21 = sbr.rel (0) target = $region17
  $region16: #{resnet1d_block_encode.1} parent=0 // pred_region
    _
  $region17: #{resnet1d_block_encode.1} parent=0 // pred_fallthru
    _
  // Predicated region
  $region18: #{resnet1d_block_encode.1} parent=0 // pred_check
    _
  $region19: #{resnet1d_block_encode.1} parent=0 // pred_check_branch
    %23 = sbr.rel (0) target = $region21
  $region20: #{resnet1d_block_encode.1} parent=0 // pred_region
    _
  $region21: #{resnet1d_block_encode.1} parent=0 // pred_fallthru
    _
  // Predicated region
  $region22: #{resnet1d_block_encode.1} parent=0 // pred_check
    _
  $region23: #{resnet1d_block_encode.1} parent=0 // pred_check_branch
    %25 = sbr.rel (0) target = $region25
  $region24: #{resnet1d_block_encode.1} parent=0 // pred_region
    _
  $region25: #{resnet1d_block_encode.1} parent=0 // pred_fallthru
    _
  // Predicated region
  $region26: #{resnet1d_block_encode.1} parent=0 // pred_check
    _
  $region27: #{resnet1d_block_encode.1} parent=0 // pred_check_branch
    %27 = sbr.rel (0) target = $region29
  $region28: #{resnet1d_block_encode.1} parent=0 // pred_region
    _
  $region29: #{resnet1d_block_encode.1} parent=0 // pred_fallthru
    _
  %v28 = vld [vmem:[%s5] sm:$0xff]
  %v29 = vld [vmem:[%s5 + $0x8] sm:$0xff]
  %v30 = vld [vmem:[%s5 + $0x10] sm:$0xff]
  %v31 = vld [vmem:[%s5 + $0x18] sm:$0xff]
  %v32 = vld [vmem:[%s5 + $0x20] sm:$0xff]
  %v33 = vld [vmem:[%s5 + $0x28] sm:$0xff]
  %v34 = vld [vmem:[%s5 + $0x30] sm:$0xff]
  %v35 = vld [vmem:[%s5 + $0x38] sm:$0xff]
  %v36 = vld [vmem:[%s5 + $0x40] sm:$0xff]
  %v37 = vld [vmem:[%s5 + $0x48] sm:$0xff]
  %v38 = vld [vmem:[%s5 + $0x50] sm:$0xff]
  %v39 = vld [vmem:[%s5 + $0x58] sm:$0xff]
  %v40 = vld [vmem:[%s5 + $0x60] sm:$0xff]
  %v41 = vld [vmem:[%s5 + $0x68] sm:$0xff]
  %v42 = vld [vmem:[%s5 + $0x70] sm:$0xff]
  %v43 = vld [vmem:[%s5 + $0x78] sm:$0xff]
  %v44 = vld [vmem:[%s0] sm:$0xff]
  %v45 = vld [vmem:[%s0 + $0x8] sm:$0xff]
  %v46 = vld [vmem:[%s0 + $0x10] sm:$0xff]
  %v47 = vld [vmem:[%s0 + $0x18] sm:$0xff]
  %v48 = vld [vmem:[%s0 + $0x20] sm:$0xff]
  %v49 = vld [vmem:[%s0 + $0x28] sm:$0xff]
  %v50 = vld [vmem:[%s0 + $0x30] sm:$0xff]
  %v51 = vld [vmem:[%s0 + $0x38] sm:$0xff]
  %v52 = vmax.f32 %v44, 0.0
  %v53 = vmax.f32 %v45, 0.0
  %v54 = vmax.f32 %v46, 0.0
  %v55 = vmax.f32 %v47, 0.0
  %v56 = vmax.f32 %v48, 0.0
  %v57 = vmax.f32 %v49, 0.0
  %v58 = vmax.f32 %v50, 0.0
  %v59 = vmax.f32 %v51, 0.0
  %v60 = vld [vmem:[%s1] sm:$0xff]
  %v61 = vld [vmem:[%s1 + $0x8] sm:$0xff]
  %v62 = vld [vmem:[%s1 + $0x10] sm:$0xff]
  %v63 = vld [vmem:[%s1 + $0x18] sm:$0xff]
  %v64 = vld [vmem:[%s1 + $0x20] sm:$0xff]
  %v65 = vld [vmem:[%s1 + $0x28] sm:$0xff]
  %v66 = vld [vmem:[%s1 + $0x30] sm:$0xff]
  %v67 = vld [vmem:[%s1 + $0x38] sm:$0xff]
  %v68 = vld [vmem:[%s1 + $0x40] sm:$0xff]
  %v69 = vld [vmem:[%s1 + $0x48] sm:$0xff]
  %v70 = vld [vmem:[%s1 + $0x50] sm:$0xff]
  %v71 = vld [vmem:[%s1 + $0x58] sm:$0xff]
  %v72 = vld [vmem:[%s1 + $0x60] sm:$0xff]
  %v73 = vld [vmem:[%s1 + $0x68] sm:$0xff]
  %v74 = vld [vmem:[%s1 + $0x70] sm:$0xff]
  %v75 = vld [vmem:[%s1 + $0x78] sm:$0xff]
  %vm76 = vcmask 523264
  %v78 = vsel %vm76, %v60, 0
  %v81 = vsel %vm76, %v61, 0
  %v84 = vsel %vm76, %v62, 0
  %v87 = vsel %vm76, %v63, 0
  %v90 = vsel %vm76, %v64, 0
  %v93 = vsel %vm76, %v65, 0
  %v96 = vsel %vm76, %v66, 0
  %v99 = vsel %vm76, %v67, 0
  %v102 = vsel %vm76, %v68, 0
  %v105 = vsel %vm76, %v69, 0
  %v108 = vsel %vm76, %v70, 0
  %v111 = vsel %vm76, %v71, 0
  %v114 = vsel %vm76, %v72, 0
  %v117 = vsel %vm76, %v73, 0
  %v120 = vsel %vm76, %v74, 0
  %v123 = vsel %vm76, %v75, 0
  %125 = vmatprep.subr.mxu0 0.0
  %126 = vmatpush1.msra.mxu0 0.0
  %127 = vmatprep.subr.mxu0 0.0
  %128 = vmatpush1.msra.mxu0 0.0
  %129 = vmatprep.subr.mxu0 0.0
  %130 = vmatpush1.msra.mxu0 0.0
  %131 = vmatprep.subr.mxu0 0.0
  %132 = vmatpush1.msra.mxu0 0.0
  %133 = vmatprep.subr.mxu0 0.0
  %134 = vmatpush1.msra.mxu0 0.0
  %135 = vmatprep.subr.mxu0 0.0
  %136 = vmatpush1.msra.mxu0 0.0
  %137 = vmatprep.subr.mxu0 0.0
  %138 = vmatpush1.msra.mxu0 0.0
  %139 = vmatprep.subr.mxu0 0.0
  %140 = vmatpush1.msra.mxu0 0.0
  %141 = vmatprep.subr.mxu0 0.0
  %142 = vmatpush1.msra.mxu0 %v59
  %143 = vmatprep.subr.mxu0 0.0
  %144 = vmatpush1.msra.mxu0 %v58
  %145 = vmatprep.subr.mxu0 0.0
  %146 = vmatpush1.msra.mxu0 %v57
  %147 = vmatprep.subr.mxu0 0.0
  %148 = vmatpush1.msra.mxu0 %v56
  %149 = vmatprep.subr.mxu0 0.0
  %150 = vmatpush1.msra.mxu0 %v55
  %151 = vmatprep.subr.mxu0 0.0
  %152 = vmatpush1.msra.mxu0 %v54
  %153 = vmatprep.subr.mxu0 0.0
  %154 = vmatpush1.msra.mxu0 %v53
  %155 = vmatprep.subr.mxu0 0.0
  %156 = vmatpush1.msra.mxu0 %v52
  %157 = vmatprep.subr.mxu0 0.0
  %158 = vmatpush2.msra.mxu0 0.0
  %159 = vmatprep.subr.mxu0 0.0
  %160 = vmatpush2.msra.mxu0 0.0
  %161 = vmatprep.subr.mxu0 0.0
  %162 = vmatpush2.msra.mxu0 0.0
  %163 = vmatprep.subr.mxu0 0.0
  %164 = vmatpush2.msra.mxu0 0.0
  %165 = vmatprep.subr.mxu0 0.0
  %166 = vmatpush2.msra.mxu0 0.0
  %167 = vmatprep.subr.mxu0 0.0
  %168 = vmatpush2.msra.mxu0 0.0
  %169 = vmatprep.subr.mxu0 0.0
  %170 = vmatpush2.msra.mxu0 0.0
  %171 = vmatprep.subr.mxu0 0.0
  %172 = vmatpush2.msra.mxu0 0.0
  %173 = vmatprep.subr.mxu0 0.0
  %174 = vmatpush2.msra.mxu0 0.0
  %175 = vmatprep.subr.mxu0 0.0
  %176 = vmatpush2.msra.mxu0 0.0
  %177 = vmatprep.subr.mxu0 0.0
  %178 = vmatpush2.msra.mxu0 0.0
  %179 = vmatprep.subr.mxu0 0.0
  %180 = vmatpush2.msra.mxu0 0.0
  %181 = vmatprep.subr.mxu0 0.0
  %182 = vmatpush2.msra.mxu0 0.0
  %183 = vmatprep.subr.mxu0 0.0
  %184 = vmatpush2.msra.mxu0 0.0
  %185 = vmatprep.subr.mxu0 0.0
  %186 = vmatpush2.msra.mxu0 0.0
  %187 = vmatprep.subr.mxu0 0.0
  %188 = vmatpush2.msra.mxu0 0.0
  %189 = vmatprep.mubr.f32.mxu0 0.0
  %190 = vmatmul.mubr.f32.gmra.mxu0 %v78
  %v191 = vpop.f32.mrf.mxu0
  %v192 = vadd.f32 0.0, %v191
  %v193 = vpop.f32.mrf.mxu0
  %194 = vmatprep.mubr.f32.mxu0 0.0
  %195 = vmatmul.mubr.f32.gmra.mxu0 %v81
  %v196 = vpop.f32.mrf.mxu0
  %v197 = vadd.f32 0.0, %v196
  %v198 = vpop.f32.mrf.mxu0
  %199 = vmatprep.mubr.f32.mxu0 0.0
  %200 = vmatmul.mubr.f32.gmra.mxu0 %v84
  %v201 = vpop.f32.mrf.mxu0
  %v202 = vadd.f32 0.0, %v201
  %v203 = vpop.f32.mrf.mxu0
  %204 = vmatprep.mubr.f32.mxu0 0.0
  %205 = vmatmul.mubr.f32.gmra.mxu0 %v87
  %v206 = vpop.f32.mrf.mxu0
  %v207 = vadd.f32 0.0, %v206
  %v208 = vpop.f32.mrf.mxu0
  %209 = vmatprep.mubr.f32.mxu0 0.0
  %210 = vmatmul.mubr.f32.gmra.mxu0 %v90
  %v211 = vpop.f32.mrf.mxu0
  %v212 = vadd.f32 0.0, %v211
  %v213 = vpop.f32.mrf.mxu0
  %214 = vmatprep.mubr.f32.mxu0 0.0
  %215 = vmatmul.mubr.f32.gmra.mxu0 %v93
  %v216 = vpop.f32.mrf.mxu0
  %v217 = vadd.f32 0.0, %v216
  %v218 = vpop.f32.mrf.mxu0
  %219 = vmatprep.mubr.f32.mxu0 0.0
  %220 = vmatmul.mubr.f32.gmra.mxu0 %v96
  %v221 = vpop.f32.mrf.mxu0
  %v222 = vadd.f32 0.0, %v221
  %v223 = vpop.f32.mrf.mxu0
  %224 = vmatprep.mubr.f32.mxu0 0.0
  %225 = vmatmul.mubr.f32.gmra.mxu0 %v99
  %v226 = vpop.f32.mrf.mxu0
  %v227 = vadd.f32 0.0, %v226
  %v228 = vpop.f32.mrf.mxu0
  %229 = vmatprep.mubr.f32.mxu0 0.0
  %230 = vmatmul.mubr.f32.gmra.mxu0 %v102
  %v231 = vpop.f32.mrf.mxu0
  %v232 = vadd.f32 0.0, %v231
  %v233 = vpop.f32.mrf.mxu0
  %234 = vmatprep.mubr.f32.mxu0 0.0
  %235 = vmatmul.mubr.f32.gmra.mxu0 %v105
  %v236 = vpop.f32.mrf.mxu0
  %v237 = vadd.f32 0.0, %v236
  %v238 = vpop.f32.mrf.mxu0
  %239 = vmatprep.mubr.f32.mxu0 0.0
  %240 = vmatmul.mubr.f32.gmra.mxu0 %v108
  %v241 = vpop.f32.mrf.mxu0
  %v242 = vadd.f32 0.0, %v241
  %v243 = vpop.f32.mrf.mxu0
  %244 = vmatprep.mubr.f32.mxu0 0.0
  %245 = vmatmul.mubr.f32.gmra.mxu0 %v111
  %v246 = vpop.f32.mrf.mxu0
  %v247 = vadd.f32 0.0, %v246
  %v248 = vpop.f32.mrf.mxu0
  %249 = vmatprep.mubr.f32.mxu0 0.0
  %250 = vmatmul.mubr.f32.gmra.mxu0 %v114
  %v251 = vpop.f32.mrf.mxu0
  %v252 = vadd.f32 0.0, %v251
  %v253 = vpop.f32.mrf.mxu0
  %254 = vmatprep.mubr.f32.mxu0 0.0
  %255 = vmatmul.mubr.f32.gmra.mxu0 %v117
  %v256 = vpop.f32.mrf.mxu0
  %v257 = vadd.f32 0.0, %v256
  %v258 = vpop.f32.mrf.mxu0
  %259 = vmatprep.mubr.f32.mxu0 0.0
  %260 = vmatmul.mubr.f32.gmra.mxu0 %v120
  %v261 = vpop.f32.mrf.mxu0
  %v262 = vadd.f32 0.0, %v261
  %v263 = vpop.f32.mrf.mxu0
  %264 = vmatprep.mubr.f32.mxu0 0.0
  %265 = vmatmul.mubr.f32.gmra.mxu0 %v123
  %v266 = vpop.f32.mrf.mxu0
  %v267 = vadd.f32 0.0, %v266
  %v268 = vpop.f32.mrf.mxu0
  %269 = vdwg.mxu0
  %270 = vst [vmem:[#allocation2] sm:$0xff] %v192
  %271 = vst [vmem:[#allocation2 + $0x8] sm:$0xff] %v197
  %272 = vst [vmem:[#allocation2 + $0x10] sm:$0xff] %v202
  %273 = vst [vmem:[#allocation2 + $0x18] sm:$0xff] %v207
  %274 = vst [vmem:[#allocation2 + $0x20] sm:$0xff] %v212
  %275 = vst [vmem:[#allocation2 + $0x28] sm:$0xff] %v217
  %276 = vst [vmem:[#allocation2 + $0x30] sm:$0xff] %v222
  %277 = vst [vmem:[#allocation2 + $0x38] sm:$0xff] %v227
  %278 = vst [vmem:[#allocation2 + $0x40] sm:$0xff] %v232
  %279 = vst [vmem:[#allocation2 + $0x48] sm:$0xff] %v237
  %280 = vst [vmem:[#allocation2 + $0x50] sm:$0xff] %v242
  %281 = vst [vmem:[#allocation2 + $0x58] sm:$0xff] %v247
  %282 = vst [vmem:[#allocation2 + $0x60] sm:$0xff] %v252
  %283 = vst [vmem:[#allocation2 + $0x68] sm:$0xff] %v257
  %284 = vst [vmem:[#allocation2 + $0x70] sm:$0xff] %v262
  %285 = vst [vmem:[#allocation2 + $0x78] sm:$0xff] %v267
  %v286 = vld [vmem:[#allocation2] sm:$0x3]
  %288 = vrot.lane.b32.xlu0 %v286, 31
  %v289 = vpop.permute.xlu0 %288
  %v291 = vld [vmem:[%s6] sm:$0x1]
  %v292 = vlaneseq
  %v293 = vshrl.u32 %v292, 7
  %v294 = vsub.s32 0, %v293
  %v295 = vrot.slane %v291, %v294
  %v296 = vmul.f32 %v289, %v295
  %v297 = vadd.f32 %v296, 0.0
  %v298 = vld [vmem:[#allocation2 + $0x2] sm:$0x3]
  %300 = vrot.lane.b32.xlu0 %v298, 30
  %v301 = vpop.permute.xlu0 %300
  %v303 = vld [vmem:[%s6 + $0x1] sm:$0x1]
  %v304 = vlaneseq
  %v305 = vshrl.u32 %v304, 7
  %v306 = vsub.s32 0, %v305
  %v307 = vrot.slane %v303, %v306
  %v308 = vmul.f32 %v301, %v307
  %v309 = vadd.f32 %v297, %v308
  %v310 = vld [vmem:[#allocation2 + $0x4] sm:$0x3]
  %312 = vrot.lane.b32.xlu0 %v310, 29
  %v313 = vpop.permute.xlu0 %312
  %v315 = vld [vmem:[%s6 + $0x2] sm:$0x1]
  %v316 = vlaneseq
  %v317 = vshrl.u32 %v316, 7
  %v318 = vsub.s32 0, %v317
  %v319 = vrot.slane %v315, %v318
  %v320 = vmul.f32 %v313, %v319
  %v321 = vadd.f32 %v309, %v320
  %v322 = vld [vmem:[#allocation2 + $0x6] sm:$0x3]
  %324 = vrot.lane.b32.xlu0 %v322, 28
  %v325 = vpop.permute.xlu0 %324
  %v327 = vld [vmem:[%s6 + $0x3] sm:$0x1]
  %v328 = vlaneseq
  %v329 = vshrl.u32 %v328, 7
  %v330 = vsub.s32 0, %v329
  %v331 = vrot.slane %v327, %v330
  %v332 = vmul.f32 %v325, %v331
  %v333 = vadd.f32 %v321, %v332
  %v334 = vld [vmem:[#allocation2 + $0x8] sm:$0x3]
  %336 = vrot.lane.b32.xlu0 %v334, 27
  %v337 = vpop.permute.xlu0 %336
  %v339 = vld [vmem:[%s6 + $0x4] sm:$0x1]
  %v340 = vlaneseq
  %v341 = vshrl.u32 %v340, 7
  %v342 = vsub.s32 0, %v341
  %v343 = vrot.slane %v339, %v342
  %v344 = vmul.f32 %v337, %v343
  %v345 = vadd.f32 %v333, %v344
  %v346 = vld [vmem:[#allocation2 + $0xa] sm:$0x3]
  %348 = vrot.lane.b32.xlu0 %v346, 26
  %v349 = vpop.permute.xlu0 %348
  %v351 = vld [vmem:[%s6 + $0x5] sm:$0x1]
  %v352 = vlaneseq
  %v353 = vshrl.u32 %v352, 7
  %v354 = vsub.s32 0, %v353
  %v355 = vrot.slane %v351, %v354
  %v356 = vmul.f32 %v349, %v355
  %v357 = vadd.f32 %v345, %v356
  %v358 = vld [vmem:[#allocation2 + $0xc] sm:$0x3]
  %360 = vrot.lane.b32.xlu0 %v358, 25
  %v361 = vpop.permute.xlu0 %360
  %v363 = vld [vmem:[%s6 + $0x6] sm:$0x1]
  %v364 = vlaneseq
  %v365 = vshrl.u32 %v364, 7
  %v366 = vsub.s32 0, %v365
  %v367 = vrot.slane %v363, %v366
  %v368 = vmul.f32 %v361, %v367
  %v369 = vadd.f32 %v357, %v368
  %v370 = vld [vmem:[#allocation2 + $0xe] sm:$0x3]
  %372 = vrot.lane.b32.xlu0 %v370, 24
  %v373 = vpop.permute.xlu0 %372
  %v375 = vld [vmem:[%s6 + $0x7] sm:$0x1]
  %v376 = vlaneseq
  %v377 = vshrl.u32 %v376, 7
  %v378 = vsub.s32 0, %v377
  %v379 = vrot.slane %v375, %v378
  %v380 = vmul.f32 %v373, %v379
  %v381 = vadd.f32 %v369, %v380
  %v382 = vld [vmem:[#allocation2 + $0x10] sm:$0x3]
  %384 = vrot.lane.b32.xlu0 %v382, 23
  %v385 = vpop.permute.xlu0 %384
  %v387 = vld [vmem:[%s6 + $0x8] sm:$0x1]
  %v388 = vlaneseq
  %v389 = vshrl.u32 %v388, 7
  %v390 = vsub.s32 0, %v389
  %v391 = vrot.slane %v387, %v390
  %v392 = vmul.f32 %v385, %v391
  %v393 = vadd.f32 %v381, %v392
  %v394 = vld [vmem:[#allocation2 + $0x12] sm:$0x3]
  %396 = vrot.lane.b32.xlu0 %v394, 22
  %v397 = vpop.permute.xlu0 %396
  %v399 = vld [vmem:[%s6 + $0x9] sm:$0x1]
  %v400 = vlaneseq
  %v401 = vshrl.u32 %v400, 7
  %v402 = vsub.s32 0, %v401
  %v403 = vrot.slane %v399, %v402
  %v404 = vmul.f32 %v397, %v403
  %v405 = vadd.f32 %v393, %v404
  %v406 = vld [vmem:[#allocation2 + $0x14] sm:$0x3]
  %408 = vrot.lane.b32.xlu0 %v406, 21
  %v409 = vpop.permute.xlu0 %408
  %v411 = vld [vmem:[%s6 + $0xa] sm:$0x1]
  %v412 = vlaneseq
  %v413 = vshrl.u32 %v412, 7
  %v414 = vsub.s32 0, %v413
  %v415 = vrot.slane %v411, %v414
  %v416 = vmul.f32 %v409, %v415
  %v417 = vadd.f32 %v405, %v416
  %v418 = vld [vmem:[#allocation2 + $0x16] sm:$0x3]
  %420 = vrot.lane.b32.xlu0 %v418, 20
  %v421 = vpop.permute.xlu0 %420
  %v423 = vld [vmem:[%s6 + $0xb] sm:$0x1]
  %v424 = vlaneseq
  %v425 = vshrl.u32 %v424, 7
  %v426 = vsub.s32 0, %v425
  %v427 = vrot.slane %v423, %v426
  %v428 = vmul.f32 %v421, %v427
  %v429 = vadd.f32 %v417, %v428
  %v430 = vld [vmem:[#allocation2 + $0x18] sm:$0x3]
  %432 = vrot.lane.b32.xlu0 %v430, 19
  %v433 = vpop.permute.xlu0 %432
  %v435 = vld [vmem:[%s6 + $0xc] sm:$0x1]
  %v436 = vlaneseq
  %v437 = vshrl.u32 %v436, 7
  %v438 = vsub.s32 0, %v437
  %v439 = vrot.slane %v435, %v438
  %v440 = vmul.f32 %v433, %v439
  %v441 = vadd.f32 %v429, %v440
  %v442 = vld [vmem:[#allocation2 + $0x1a] sm:$0x3]
  %444 = vrot.lane.b32.xlu0 %v442, 18
  %v445 = vpop.permute.xlu0 %444
  %v447 = vld [vmem:[%s6 + $0xd] sm:$0x1]
  %v448 = vlaneseq
  %v449 = vshrl.u32 %v448, 7
  %v450 = vsub.s32 0, %v449
  %v451 = vrot.slane %v447, %v450
  %v452 = vmul.f32 %v445, %v451
  %v453 = vadd.f32 %v441, %v452
  %v454 = vld [vmem:[#allocation2 + $0x1c] sm:$0x3]
  %456 = vrot.lane.b32.xlu0 %v454, 17
  %v457 = vpop.permute.xlu0 %456
  %v459 = vld [vmem:[%s6 + $0xe] sm:$0x1]
  %v460 = vlaneseq
  %v461 = vshrl.u32 %v460, 7
  %v462 = vsub.s32 0, %v461
  %v463 = vrot.slane %v459, %v462
  %v464 = vmul.f32 %v457, %v463
  %v465 = vadd.f32 %v453, %v464
  %v466 = vld [vmem:[#allocation2 + $0x1e] sm:$0x3]
  %468 = vrot.lane.b32.xlu0 %v466, 16
  %v469 = vpop.permute.xlu0 %468
  %v471 = vld [vmem:[%s6 + $0xf] sm:$0x1]
  %v472 = vlaneseq
  %v473 = vshrl.u32 %v472, 7
  %v474 = vsub.s32 0, %v473
  %v475 = vrot.slane %v471, %v474
  %v476 = vmul.f32 %v469, %v475
  %v477 = vadd.f32 %v465, %v476
  %v478 = vld [vmem:[#allocation2 + $0x20] sm:$0x3]
  %480 = vrot.lane.b32.xlu0 %v478, 15
  %v481 = vpop.permute.xlu0 %480
  %v483 = vld [vmem:[%s6 + $0x10] sm:$0x1]
  %v484 = vlaneseq
  %v485 = vshrl.u32 %v484, 7
  %v486 = vsub.s32 0, %v485
  %v487 = vrot.slane %v483, %v486
  %v488 = vmul.f32 %v481, %v487
  %v489 = vadd.f32 %v477, %v488
  %v490 = vld [vmem:[#allocation2 + $0x22] sm:$0x3]
  %492 = vrot.lane.b32.xlu0 %v490, 14
  %v493 = vpop.permute.xlu0 %492
  %v495 = vld [vmem:[%s6 + $0x11] sm:$0x1]
  %v496 = vlaneseq
  %v497 = vshrl.u32 %v496, 7
  %v498 = vsub.s32 0, %v497
  %v499 = vrot.slane %v495, %v498
  %v500 = vmul.f32 %v493, %v499
  %v501 = vadd.f32 %v489, %v500
  %v502 = vld [vmem:[#allocation2 + $0x24] sm:$0x3]
  %504 = vrot.lane.b32.xlu0 %v502, 13
  %v505 = vpop.permute.xlu0 %504
  %v507 = vld [vmem:[%s6 + $0x12] sm:$0x1]
  %v508 = vlaneseq
  %v509 = vshrl.u32 %v508, 7
  %v510 = vsub.s32 0, %v509
  %v511 = vrot.slane %v507, %v510
  %v512 = vmul.f32 %v505, %v511
  %v513 = vadd.f32 %v501, %v512
  %v514 = vld [vmem:[#allocation2 + $0x26] sm:$0x3]
  %516 = vrot.lane.b32.xlu0 %v514, 12
  %v517 = vpop.permute.xlu0 %516
  %v519 = vld [vmem:[%s6 + $0x13] sm:$0x1]
  %v520 = vlaneseq
  %v521 = vshrl.u32 %v520, 7
  %v522 = vsub.s32 0, %v521
  %v523 = vrot.slane %v519, %v522
  %v524 = vmul.f32 %v517, %v523
  %v525 = vadd.f32 %v513, %v524
  %v526 = vld [vmem:[#allocation2 + $0x28] sm:$0x3]
  %528 = vrot.lane.b32.xlu0 %v526, 11
  %v529 = vpop.permute.xlu0 %528
  %v531 = vld [vmem:[%s6 + $0x14] sm:$0x1]
  %v532 = vlaneseq
  %v533 = vshrl.u32 %v532, 7
  %v534 = vsub.s32 0, %v533
  %v535 = vrot.slane %v531, %v534
  %v536 = vmul.f32 %v529, %v535
  %v537 = vadd.f32 %v525, %v536
  %v538 = vld [vmem:[#allocation2 + $0x2a] sm:$0x3]
  %540 = vrot.lane.b32.xlu0 %v538, 10
  %v541 = vpop.permute.xlu0 %540
  %v543 = vld [vmem:[%s6 + $0x15] sm:$0x1]
  %v544 = vlaneseq
  %v545 = vshrl.u32 %v544, 7
  %v546 = vsub.s32 0, %v545
  %v547 = vrot.slane %v543, %v546
  %v548 = vmul.f32 %v541, %v547
  %v549 = vadd.f32 %v537, %v548
  %v550 = vld [vmem:[#allocation2 + $0x2c] sm:$0x3]
  %552 = vrot.lane.b32.xlu0 %v550, 9
  %v553 = vpop.permute.xlu0 %552
  %v555 = vld [vmem:[%s6 + $0x16] sm:$0x1]
  %v556 = vlaneseq
  %v557 = vshrl.u32 %v556, 7
  %v558 = vsub.s32 0, %v557
  %v559 = vrot.slane %v555, %v558
  %v560 = vmul.f32 %v553, %v559
  %v561 = vadd.f32 %v549, %v560
  %v562 = vld [vmem:[#allocation2 + $0x2e] sm:$0x3]
  %564 = vrot.lane.b32.xlu0 %v562, 8
  %v565 = vpop.permute.xlu0 %564
  %v567 = vld [vmem:[%s6 + $0x17] sm:$0x1]
  %v568 = vlaneseq
  %v569 = vshrl.u32 %v568, 7
  %v570 = vsub.s32 0, %v569
  %v571 = vrot.slane %v567, %v570
  %v572 = vmul.f32 %v565, %v571
  %v573 = vadd.f32 %v561, %v572
  %v574 = vld [vmem:[#allocation2 + $0x30] sm:$0x3]
  %576 = vrot.lane.b32.xlu0 %v574, 7
  %v577 = vpop.permute.xlu0 %576
  %v579 = vld [vmem:[%s6 + $0x18] sm:$0x1]
  %v580 = vlaneseq
  %v581 = vshrl.u32 %v580, 7
  %v582 = vsub.s32 0, %v581
  %v583 = vrot.slane %v579, %v582
  %v584 = vmul.f32 %v577, %v583
  %v585 = vadd.f32 %v573, %v584
  %v586 = vld [vmem:[#allocation2 + $0x32] sm:$0x3]
  %588 = vrot.lane.b32.xlu0 %v586, 6
  %v589 = vpop.permute.xlu0 %588
  %v591 = vld [vmem:[%s6 + $0x19] sm:$0x1]
  %v592 = vlaneseq
  %v593 = vshrl.u32 %v592, 7
  %v594 = vsub.s32 0, %v593
  %v595 = vrot.slane %v591, %v594
  %v596 = vmul.f32 %v589, %v595
  %v597 = vadd.f32 %v585, %v596
  %v598 = vld [vmem:[#allocation2 + $0x34] sm:$0x3]
  %600 = vrot.lane.b32.xlu0 %v598, 5
  %v601 = vpop.permute.xlu0 %600
  %v603 = vld [vmem:[%s6 + $0x1a] sm:$0x1]
  %v604 = vlaneseq
  %v605 = vshrl.u32 %v604, 7
  %v606 = vsub.s32 0, %v605
  %v607 = vrot.slane %v603, %v606
  %v608 = vmul.f32 %v601, %v607
  %v609 = vadd.f32 %v597, %v608
  %v610 = vld [vmem:[#allocation2 + $0x36] sm:$0x3]
  %612 = vrot.lane.b32.xlu0 %v610, 4
  %v613 = vpop.permute.xlu0 %612
  %v615 = vld [vmem:[%s6 + $0x1b] sm:$0x1]
  %v616 = vlaneseq
  %v617 = vshrl.u32 %v616, 7
  %v618 = vsub.s32 0, %v617
  %v619 = vrot.slane %v615, %v618
  %v620 = vmul.f32 %v613, %v619
  %v621 = vadd.f32 %v609, %v620
  %v622 = vld [vmem:[#allocation2 + $0x38] sm:$0x3]
  %624 = vrot.lane.b32.xlu0 %v622, 3
  %v625 = vpop.permute.xlu0 %624
  %v627 = vld [vmem:[%s6 + $0x1c] sm:$0x1]
  %v628 = vlaneseq
  %v629 = vshrl.u32 %v628, 7
  %v630 = vsub.s32 0, %v629
  %v631 = vrot.slane %v627, %v630
  %v632 = vmul.f32 %v625, %v631
  %v633 = vadd.f32 %v621, %v632
  %v634 = vld [vmem:[#allocation2 + $0x3a] sm:$0x3]
  %636 = vrot.lane.b32.xlu0 %v634, 2
  %v637 = vpop.permute.xlu0 %636
  %v639 = vld [vmem:[%s6 + $0x1d] sm:$0x1]
  %v640 = vlaneseq
  %v641 = vshrl.u32 %v640, 7
  %v642 = vsub.s32 0, %v641
  %v643 = vrot.slane %v639, %v642
  %v644 = vmul.f32 %v637, %v643
  %v645 = vadd.f32 %v633, %v644
  %v646 = vld [vmem:[#allocation2 + $0x3c] sm:$0x3]
  %648 = vrot.lane.b32.xlu0 %v646, 1
  %v649 = vpop.permute.xlu0 %648
  %v651 = vld [vmem:[%s6 + $0x1e] sm:$0x1]
  %v652 = vlaneseq
  %v653 = vshrl.u32 %v652, 7
  %v654 = vsub.s32 0, %v653
  %v655 = vrot.slane %v651, %v654
  %v656 = vmul.f32 %v649, %v655
  %v657 = vadd.f32 %v645, %v656
  %v658 = vld [vmem:[#allocation2 + $0x3e] sm:$0x3]
  %v659 = vld [vmem:[%s6 + $0x1f] sm:$0x1]
  %v660 = vlaneseq
  %v661 = vshrl.u32 %v660, 7
  %v662 = vsub.s32 0, %v661
  %v663 = vrot.slane %v659, %v662
  %v664 = vmul.f32 %v658, %v663
  %v665 = vadd.f32 %v657, %v664
  %v666 = vld [vmem:[#allocation2 + $0x40] sm:$0x3]
  %668 = vrot.lane.b32.xlu0 %v666, 127
  %v669 = vpop.permute.xlu0 %668
  %v671 = vld [vmem:[%s6 + $0x20] sm:$0x1]
  %v672 = vlaneseq
  %v673 = vshrl.u32 %v672, 7
  %v674 = vsub.s32 0, %v673
  %v675 = vrot.slane %v671, %v674
  %v676 = vmul.f32 %v669, %v675
  %v677 = vadd.f32 %v665, %v676
  %v678 = vld [vmem:[#allocation2 + $0x42] sm:$0x3]
  %680 = vrot.lane.b32.xlu0 %v678, 126
  %v681 = vpop.permute.xlu0 %680
  %v683 = vld [vmem:[%s6 + $0x21] sm:$0x1]
  %v684 = vlaneseq
  %v685 = vshrl.u32 %v684, 7
  %v686 = vsub.s32 0, %v685
  %v687 = vrot.slane %v683, %v686
  %v688 = vmul.f32 %v681, %v687
  %v689 = vadd.f32 %v677, %v688
  %v690 = vld [vmem:[#allocation2 + $0x44] sm:$0x3]
  %692 = vrot.lane.b32.xlu0 %v690, 125
  %v693 = vpop.permute.xlu0 %692
  %v695 = vld [vmem:[%s6 + $0x22] sm:$0x1]
  %v696 = vlaneseq
  %v697 = vshrl.u32 %v696, 7
  %v698 = vsub.s32 0, %v697
  %v699 = vrot.slane %v695, %v698
  %v700 = vmul.f32 %v693, %v699
  %v701 = vadd.f32 %v689, %v700
  %v702 = vld [vmem:[#allocation2 + $0x46] sm:$0x3]
  %704 = vrot.lane.b32.xlu0 %v702, 124
  %v705 = vpop.permute.xlu0 %704
  %v707 = vld [vmem:[%s6 + $0x23] sm:$0x1]
  %v708 = vlaneseq
  %v709 = vshrl.u32 %v708, 7
  %v710 = vsub.s32 0, %v709
  %v711 = vrot.slane %v707, %v710
  %v712 = vmul.f32 %v705, %v711
  %v713 = vadd.f32 %v701, %v712
  %v714 = vld [vmem:[#allocation2 + $0x48] sm:$0x3]
  %716 = vrot.lane.b32.xlu0 %v714, 123
  %v717 = vpop.permute.xlu0 %716
  %v719 = vld [vmem:[%s6 + $0x24] sm:$0x1]
  %v720 = vlaneseq
  %v721 = vshrl.u32 %v720, 7
  %v722 = vsub.s32 0, %v721
  %v723 = vrot.slane %v719, %v722
  %v724 = vmul.f32 %v717, %v723
  %v725 = vadd.f32 %v713, %v724
  %v726 = vld [vmem:[#allocation2 + $0x4a] sm:$0x3]
  %728 = vrot.lane.b32.xlu0 %v726, 122
  %v729 = vpop.permute.xlu0 %728
  %v731 = vld [vmem:[%s6 + $0x25] sm:$0x1]
  %v732 = vlaneseq
  %v733 = vshrl.u32 %v732, 7
  %v734 = vsub.s32 0, %v733
  %v735 = vrot.slane %v731, %v734
  %v736 = vmul.f32 %v729, %v735
  %v737 = vadd.f32 %v725, %v736
  %v738 = vld [vmem:[#allocation2 + $0x4c] sm:$0x3]
  %740 = vrot.lane.b32.xlu0 %v738, 121
  %v741 = vpop.permute.xlu0 %740
  %v743 = vld [vmem:[%s6 + $0x26] sm:$0x1]
  %v744 = vlaneseq
  %v745 = vshrl.u32 %v744, 7
  %v746 = vsub.s32 0, %v745
  %v747 = vrot.slane %v743, %v746
  %v748 = vmul.f32 %v741, %v747
  %v749 = vadd.f32 %v737, %v748
  %v750 = vld [vmem:[#allocation2 + $0x4e] sm:$0x3]
  %752 = vrot.lane.b32.xlu0 %v750, 120
  %v753 = vpop.permute.xlu0 %752
  %v755 = vld [vmem:[%s6 + $0x27] sm:$0x1]
  %v756 = vlaneseq
  %v757 = vshrl.u32 %v756, 7
  %v758 = vsub.s32 0, %v757
  %v759 = vrot.slane %v755, %v758
  %v760 = vmul.f32 %v753, %v759
  %v761 = vadd.f32 %v749, %v760
  %v762 = vld [vmem:[#allocation2 + $0x50] sm:$0x3]
  %764 = vrot.lane.b32.xlu0 %v762, 119
  %v765 = vpop.permute.xlu0 %764
  %v767 = vld [vmem:[%s6 + $0x28] sm:$0x1]
  %v768 = vlaneseq
  %v769 = vshrl.u32 %v768, 7
  %v770 = vsub.s32 0, %v769
  %v771 = vrot.slane %v767, %v770
  %v772 = vmul.f32 %v765, %v771
  %v773 = vadd.f32 %v761, %v772
  %v774 = vld [vmem:[#allocation2 + $0x52] sm:$0x3]
  %776 = vrot.lane.b32.xlu0 %v774, 118
  %v777 = vpop.permute.xlu0 %776
  %v779 = vld [vmem:[%s6 + $0x29] sm:$0x1]
  %v780 = vlaneseq
  %v781 = vshrl.u32 %v780, 7
  %v782 = vsub.s32 0, %v781
  %v783 = vrot.slane %v779, %v782
  %v784 = vmul.f32 %v777, %v783
  %v785 = vadd.f32 %v773, %v784
  %v786 = vld [vmem:[#allocation2 + $0x54] sm:$0x3]
  %788 = vrot.lane.b32.xlu0 %v786, 117
  %v789 = vpop.permute.xlu0 %788
  %v791 = vld [vmem:[%s6 + $0x2a] sm:$0x1]
  %v792 = vlaneseq
  %v793 = vshrl.u32 %v792, 7
  %v794 = vsub.s32 0, %v793
  %v795 = vrot.slane %v791, %v794
  %v796 = vmul.f32 %v789, %v795
  %v797 = vadd.f32 %v785, %v796
  %v798 = vld [vmem:[#allocation2 + $0x56] sm:$0x3]
  %800 = vrot.lane.b32.xlu0 %v798, 116
  %v801 = vpop.permute.xlu0 %800
  %v803 = vld [vmem:[%s6 + $0x2b] sm:$0x1]
  %v804 = vlaneseq
  %v805 = vshrl.u32 %v804, 7
  %v806 = vsub.s32 0, %v805
  %v807 = vrot.slane %v803, %v806
  %v808 = vmul.f32 %v801, %v807
  %v809 = vadd.f32 %v797, %v808
  %v810 = vld [vmem:[#allocation2 + $0x58] sm:$0x3]
  %812 = vrot.lane.b32.xlu0 %v810, 115
  %v813 = vpop.permute.xlu0 %812
  %v815 = vld [vmem:[%s6 + $0x2c] sm:$0x1]
  %v816 = vlaneseq
  %v817 = vshrl.u32 %v816, 7
  %v818 = vsub.s32 0, %v817
  %v819 = vrot.slane %v815, %v818
  %v820 = vmul.f32 %v813, %v819
  %v821 = vadd.f32 %v809, %v820
  %v822 = vld [vmem:[#allocation2 + $0x5a] sm:$0x3]
  %824 = vrot.lane.b32.xlu0 %v822, 114
  %v825 = vpop.permute.xlu0 %824
  %v827 = vld [vmem:[%s6 + $0x2d] sm:$0x1]
  %v828 = vlaneseq
  %v829 = vshrl.u32 %v828, 7
  %v830 = vsub.s32 0, %v829
  %v831 = vrot.slane %v827, %v830
  %v832 = vmul.f32 %v825, %v831
  %v833 = vadd.f32 %v821, %v832
  %v834 = vld [vmem:[#allocation2 + $0x5c] sm:$0x3]
  %836 = vrot.lane.b32.xlu0 %v834, 113
  %v837 = vpop.permute.xlu0 %836
  %v839 = vld [vmem:[%s6 + $0x2e] sm:$0x1]
  %v840 = vlaneseq
  %v841 = vshrl.u32 %v840, 7
  %v842 = vsub.s32 0, %v841
  %v843 = vrot.slane %v839, %v842
  %v844 = vmul.f32 %v837, %v843
  %v845 = vadd.f32 %v833, %v844
  %v846 = vld [vmem:[#allocation2 + $0x5e] sm:$0x3]
  %848 = vrot.lane.b32.xlu0 %v846, 112
  %v849 = vpop.permute.xlu0 %848
  %v851 = vld [vmem:[%s6 + $0x2f] sm:$0x1]
  %v852 = vlaneseq
  %v853 = vshrl.u32 %v852, 7
  %v854 = vsub.s32 0, %v853
  %v855 = vrot.slane %v851, %v854
  %v856 = vmul.f32 %v849, %v855
  %v857 = vadd.f32 %v845, %v856
  %v858 = vld [vmem:[#allocation2 + $0x60] sm:$0x3]
  %860 = vrot.lane.b32.xlu0 %v858, 111
  %v861 = vpop.permute.xlu0 %860
  %v863 = vld [vmem:[%s6 + $0x30] sm:$0x1]
  %v864 = vlaneseq
  %v865 = vshrl.u32 %v864, 7
  %v866 = vsub.s32 0, %v865
  %v867 = vrot.slane %v863, %v866
  %v868 = vmul.f32 %v861, %v867
  %v869 = vadd.f32 %v857, %v868
  %v870 = vld [vmem:[#allocation2 + $0x62] sm:$0x3]
  %872 = vrot.lane.b32.xlu0 %v870, 110
  %v873 = vpop.permute.xlu0 %872
  %v875 = vld [vmem:[%s6 + $0x31] sm:$0x1]
  %v876 = vlaneseq
  %v877 = vshrl.u32 %v876, 7
  %v878 = vsub.s32 0, %v877
  %v879 = vrot.slane %v875, %v878
  %v880 = vmul.f32 %v873, %v879
  %v881 = vadd.f32 %v869, %v880
  %v882 = vld [vmem:[#allocation2 + $0x64] sm:$0x3]
  %884 = vrot.lane.b32.xlu0 %v882, 109
  %v885 = vpop.permute.xlu0 %884
  %v887 = vld [vmem:[%s6 + $0x32] sm:$0x1]
  %v888 = vlaneseq
  %v889 = vshrl.u32 %v888, 7
  %v890 = vsub.s32 0, %v889
  %v891 = vrot.slane %v887, %v890
  %v892 = vmul.f32 %v885, %v891
  %v893 = vadd.f32 %v881, %v892
  %v894 = vld [vmem:[#allocation2 + $0x66] sm:$0x3]
  %896 = vrot.lane.b32.xlu0 %v894, 108
  %v897 = vpop.permute.xlu0 %896
  %v899 = vld [vmem:[%s6 + $0x33] sm:$0x1]
  %v900 = vlaneseq
  %v901 = vshrl.u32 %v900, 7
  %v902 = vsub.s32 0, %v901
  %v903 = vrot.slane %v899, %v902
  %v904 = vmul.f32 %v897, %v903
  %v905 = vadd.f32 %v893, %v904
  %v906 = vld [vmem:[#allocation2 + $0x68] sm:$0x3]
  %908 = vrot.lane.b32.xlu0 %v906, 107
  %v909 = vpop.permute.xlu0 %908
  %v911 = vld [vmem:[%s6 + $0x34] sm:$0x1]
  %v912 = vlaneseq
  %v913 = vshrl.u32 %v912, 7
  %v914 = vsub.s32 0, %v913
  %v915 = vrot.slane %v911, %v914
  %v916 = vmul.f32 %v909, %v915
  %v917 = vadd.f32 %v905, %v916
  %v918 = vld [vmem:[#allocation2 + $0x6a] sm:$0x3]
  %920 = vrot.lane.b32.xlu0 %v918, 106
  %v921 = vpop.permute.xlu0 %920
  %v923 = vld [vmem:[%s6 + $0x35] sm:$0x1]
  %v924 = vlaneseq
  %v925 = vshrl.u32 %v924, 7
  %v926 = vsub.s32 0, %v925
  %v927 = vrot.slane %v923, %v926
  %v928 = vmul.f32 %v921, %v927
  %v929 = vadd.f32 %v917, %v928
  %v930 = vld [vmem:[#allocation2 + $0x6c] sm:$0x3]
  %932 = vrot.lane.b32.xlu0 %v930, 105
  %v933 = vpop.permute.xlu0 %932
  %v935 = vld [vmem:[%s6 + $0x36] sm:$0x1]
  %v936 = vlaneseq
  %v937 = vshrl.u32 %v936, 7
  %v938 = vsub.s32 0, %v937
  %v939 = vrot.slane %v935, %v938
  %v940 = vmul.f32 %v933, %v939
  %v941 = vadd.f32 %v929, %v940
  %v942 = vld [vmem:[#allocation2 + $0x6e] sm:$0x3]
  %944 = vrot.lane.b32.xlu0 %v942, 104
  %v945 = vpop.permute.xlu0 %944
  %v947 = vld [vmem:[%s6 + $0x37] sm:$0x1]
  %v948 = vlaneseq
  %v949 = vshrl.u32 %v948, 7
  %v950 = vsub.s32 0, %v949
  %v951 = vrot.slane %v947, %v950
  %v952 = vmul.f32 %v945, %v951
  %v953 = vadd.f32 %v941, %v952
  %v954 = vld [vmem:[#allocation2 + $0x70] sm:$0x3]
  %956 = vrot.lane.b32.xlu0 %v954, 103
  %v957 = vpop.permute.xlu0 %956
  %v959 = vld [vmem:[%s6 + $0x38] sm:$0x1]
  %v960 = vlaneseq
  %v961 = vshrl.u32 %v960, 7
  %v962 = vsub.s32 0, %v961
  %v963 = vrot.slane %v959, %v962
  %v964 = vmul.f32 %v957, %v963
  %v965 = vadd.f32 %v953, %v964
  %v966 = vld [vmem:[#allocation2 + $0x72] sm:$0x3]
  %968 = vrot.lane.b32.xlu0 %v966, 102
  %v969 = vpop.permute.xlu0 %968
  %v971 = vld [vmem:[%s6 + $0x39] sm:$0x1]
  %v972 = vlaneseq
  %v973 = vshrl.u32 %v972, 7
  %v974 = vsub.s32 0, %v973
  %v975 = vrot.slane %v971, %v974
  %v976 = vmul.f32 %v969, %v975
  %v977 = vadd.f32 %v965, %v976
  %v978 = vld [vmem:[#allocation2 + $0x74] sm:$0x3]
  %980 = vrot.lane.b32.xlu0 %v978, 101
  %v981 = vpop.permute.xlu0 %980
  %v983 = vld [vmem:[%s6 + $0x3a] sm:$0x1]
  %v984 = vlaneseq
  %v985 = vshrl.u32 %v984, 7
  %v986 = vsub.s32 0, %v985
  %v987 = vrot.slane %v983, %v986
  %v988 = vmul.f32 %v981, %v987
  %v989 = vadd.f32 %v977, %v988
  %v990 = vld [vmem:[#allocation2 + $0x76] sm:$0x3]
  %992 = vrot.lane.b32.xlu0 %v990, 100
  %v993 = vpop.permute.xlu0 %992
  %v995 = vld [vmem:[%s6 + $0x3b] sm:$0x1]
  %v996 = vlaneseq
  %v997 = vshrl.u32 %v996, 7
  %v998 = vsub.s32 0, %v997
  %v999 = vrot.slane %v995, %v998
  %v1000 = vmul.f32 %v993, %v999
  %v1001 = vadd.f32 %v989, %v1000
  %v1002 = vld [vmem:[#allocation2 + $0x78] sm:$0x3]
  %1004 = vrot.lane.b32.xlu0 %v1002, 99
  %v1005 = vpop.permute.xlu0 %1004
  %v1007 = vld [vmem:[%s6 + $0x3c] sm:$0x1]
  %v1008 = vlaneseq
  %v1009 = vshrl.u32 %v1008, 7
  %v1010 = vsub.s32 0, %v1009
  %v1011 = vrot.slane %v1007, %v1010
  %v1012 = vmul.f32 %v1005, %v1011
  %v1013 = vadd.f32 %v1001, %v1012
  %v1014 = vld [vmem:[#allocation2 + $0x7a] sm:$0x3]
  %1016 = vrot.lane.b32.xlu0 %v1014, 98
  %v1017 = vpop.permute.xlu0 %1016
  %v1019 = vld [vmem:[%s6 + $0x3d] sm:$0x1]
  %v1020 = vlaneseq
  %v1021 = vshrl.u32 %v1020, 7
  %v1022 = vsub.s32 0, %v1021
  %v1023 = vrot.slane %v1019, %v1022
  %v1024 = vmul.f32 %v1017, %v1023
  %v1025 = vadd.f32 %v1013, %v1024
  %v1026 = vld [vmem:[#allocation2 + $0x7c] sm:$0x3]
  %1028 = vrot.lane.b32.xlu0 %v1026, 97
  %v1029 = vpop.permute.xlu0 %1028
  %v1031 = vld [vmem:[%s6 + $0x3e] sm:$0x1]
  %v1032 = vlaneseq
  %v1033 = vshrl.u32 %v1032, 7
  %v1034 = vsub.s32 0, %v1033
  %v1035 = vrot.slane %v1031, %v1034
  %v1036 = vmul.f32 %v1029, %v1035
  %v1037 = vadd.f32 %v1025, %v1036
  %v1038 = vld [vmem:[#allocation2 + $0x7e] sm:$0x3]
  %1040 = vrot.lane.b32.xlu0 %v1038, 96
  %v1041 = vpop.permute.xlu0 %1040
  %v1043 = vld [vmem:[%s6 + $0x3f] sm:$0x1]
  %v1044 = vlaneseq
  %v1045 = vshrl.u32 %v1044, 7
  %v1046 = vsub.s32 0, %v1045
  %v1047 = vrot.slane %v1043, %v1046
  %v1048 = vmul.f32 %v1041, %v1047
  %v1049 = vadd.f32 %v1037, %v1048
  %v1050 = vld [vmem:[%s2] sm:$0x3]
  %1052 = vset.pattern.permute.xlu0 0
  %1053 = vperm.xlu0 %1052, %v1050
  %v1054 = vpop.permute.xlu0 %1053
  %v1056 = vadd.f32 %v1049, %v1054
  %1057 = vmatprep.subr.mxu0 0.0
  %1058 = vmatpush1.msra.mxu0 %v43
  %1059 = vmatprep.subr.mxu0 0.0
  %1060 = vmatpush1.msra.mxu0 %v42
  %1061 = vmatprep.subr.mxu0 0.0
  %1062 = vmatpush1.msra.mxu0 %v41
  %1063 = vmatprep.subr.mxu0 0.0
  %1064 = vmatpush1.msra.mxu0 %v40
  %1065 = vmatprep.subr.mxu0 0.0
  %1066 = vmatpush1.msra.mxu0 %v39
  %1067 = vmatprep.subr.mxu0 0.0
  %1068 = vmatpush1.msra.mxu0 %v38
  %1069 = vmatprep.subr.mxu0 0.0
  %1070 = vmatpush1.msra.mxu0 %v37
  %1071 = vmatprep.subr.mxu0 0.0
  %1072 = vmatpush1.msra.mxu0 %v36
  %1073 = vmatprep.subr.mxu0 0.0
  %1074 = vmatpush1.msra.mxu0 %v35
  %1075 = vmatprep.subr.mxu0 0.0
  %1076 = vmatpush1.msra.mxu0 %v34
  %1077 = vmatprep.subr.mxu0 0.0
  %1078 = vmatpush1.msra.mxu0 %v33
  %1079 = vmatprep.subr.mxu0 0.0
  %1080 = vmatpush1.msra.mxu0 %v32
  %1081 = vmatprep.subr.mxu0 0.0
  %1082 = vmatpush1.msra.mxu0 %v31
  %1083 = vmatprep.subr.mxu0 0.0
  %1084 = vmatpush1.msra.mxu0 %v30
  %1085 = vmatprep.subr.mxu0 0.0
  %1086 = vmatpush1.msra.mxu0 %v29
  %1087 = vmatprep.subr.mxu0 0.0
  %1088 = vmatpush1.msra.mxu0 %v28
  %1089 = vmatprep.subr.mxu0 0.0
  %1090 = vmatpush2.msra.mxu0 0.0
  %1091 = vmatprep.subr.mxu0 0.0
  %1092 = vmatpush2.msra.mxu0 0.0
  %1093 = vmatprep.subr.mxu0 0.0
  %1094 = vmatpush2.msra.mxu0 0.0
  %1095 = vmatprep.subr.mxu0 0.0
  %1096 = vmatpush2.msra.mxu0 0.0
  %1097 = vmatprep.subr.mxu0 0.0
  %1098 = vmatpush2.msra.mxu0 0.0
  %1099 = vmatprep.subr.mxu0 0.0
  %1100 = vmatpush2.msra.mxu0 0.0
  %1101 = vmatprep.subr.mxu0 0.0
  %1102 = vmatpush2.msra.mxu0 0.0
  %1103 = vmatprep.subr.mxu0 0.0
  %1104 = vmatpush2.msra.mxu0 0.0
  %1105 = vmatprep.subr.mxu0 0.0
  %1106 = vmatpush2.msra.mxu0 0.0
  %1107 = vmatprep.subr.mxu0 0.0
  %1108 = vmatpush2.msra.mxu0 0.0
  %1109 = vmatprep.subr.mxu0 0.0
  %1110 = vmatpush2.msra.mxu0 0.0
  %1111 = vmatprep.subr.mxu0 0.0
  %1112 = vmatpush2.msra.mxu0 0.0
  %1113 = vmatprep.subr.mxu0 0.0
  %1114 = vmatpush2.msra.mxu0 0.0
  %1115 = vmatprep.subr.mxu0 0.0
  %1116 = vmatpush2.msra.mxu0 0.0
  %1117 = vmatprep.subr.mxu0 0.0
  %1118 = vmatpush2.msra.mxu0 0.0
  %1119 = vmatprep.subr.mxu0 0.0
  %1120 = vmatpush2.msra.mxu0 0.0
  %1121 = vmatprep.mubr.f32.mxu0 0.0
  %1122 = vmatmul.mubr.f32.gmra.mxu0 %v1056
  %v1123 = vpop.f32.mrf.mxu0
  %v1124 = vadd.f32 0.0, %v1123
  %v1125 = vpop.f32.mrf.mxu0
  %1126 = vdwg.mxu0
  %v1127 = vsub.f32 %v1056, %v1124
  %v1128 = vmul.f32 %v1127, %v1127
  %1129 = vmatprep.subr.mxu0 0.0
  %1130 = vmatpush1.msra.mxu0 %v43
  %1131 = vmatprep.subr.mxu0 0.0
  %1132 = vmatpush1.msra.mxu0 %v42
  %1133 = vmatprep.subr.mxu0 0.0
  %1134 = vmatpush1.msra.mxu0 %v41
  %1135 = vmatprep.subr.mxu0 0.0
  %1136 = vmatpush1.msra.mxu0 %v40
  %1137 = vmatprep.subr.mxu0 0.0
  %1138 = vmatpush1.msra.mxu0 %v39
  %1139 = vmatprep.subr.mxu0 0.0
  %1140 = vmatpush1.msra.mxu0 %v38
  %1141 = vmatprep.subr.mxu0 0.0
  %1142 = vmatpush1.msra.mxu0 %v37
  %1143 = vmatprep.subr.mxu0 0.0
  %1144 = vmatpush1.msra.mxu0 %v36
  %1145 = vmatprep.subr.mxu0 0.0
  %1146 = vmatpush1.msra.mxu0 %v35
  %1147 = vmatprep.subr.mxu0 0.0
  %1148 = vmatpush1.msra.mxu0 %v34
  %1149 = vmatprep.subr.mxu0 0.0
  %1150 = vmatpush1.msra.mxu0 %v33
  %1151 = vmatprep.subr.mxu0 0.0
  %1152 = vmatpush1.msra.mxu0 %v32
  %1153 = vmatprep.subr.mxu0 0.0
  %1154 = vmatpush1.msra.mxu0 %v31
  %1155 = vmatprep.subr.mxu0 0.0
  %1156 = vmatpush1.msra.mxu0 %v30
  %1157 = vmatprep.subr.mxu0 0.0
  %1158 = vmatpush1.msra.mxu0 %v29
  %1159 = vmatprep.subr.mxu0 0.0
  %1160 = vmatpush1.msra.mxu0 %v28
  %1161 = vmatprep.subr.mxu0 0.0
  %1162 = vmatpush2.msra.mxu0 0.0
  %1163 = vmatprep.subr.mxu0 0.0
  %1164 = vmatpush2.msra.mxu0 0.0
  %1165 = vmatprep.subr.mxu0 0.0
  %1166 = vmatpush2.msra.mxu0 0.0
  %1167 = vmatprep.subr.mxu0 0.0
  %1168 = vmatpush2.msra.mxu0 0.0
  %1169 = vmatprep.subr.mxu0 0.0
  %1170 = vmatpush2.msra.mxu0 0.0
  %1171 = vmatprep.subr.mxu0 0.0
  %1172 = vmatpush2.msra.mxu0 0.0
  %1173 = vmatprep.subr.mxu0 0.0
  %1174 = vmatpush2.msra.mxu0 0.0
  %1175 = vmatprep.subr.mxu0 0.0
  %1176 = vmatpush2.msra.mxu0 0.0
  %1177 = vmatprep.subr.mxu0 0.0
  %1178 = vmatpush2.msra.mxu0 0.0
  %1179 = vmatprep.subr.mxu0 0.0
  %1180 = vmatpush2.msra.mxu0 0.0
  %1181 = vmatprep.subr.mxu0 0.0
  %1182 = vmatpush2.msra.mxu0 0.0
  %1183 = vmatprep.subr.mxu0 0.0
  %1184 = vmatpush2.msra.mxu0 0.0
  %1185 = vmatprep.subr.mxu0 0.0
  %1186 = vmatpush2.msra.mxu0 0.0
  %1187 = vmatprep.subr.mxu0 0.0
  %1188 = vmatpush2.msra.mxu0 0.0
  %1189 = vmatprep.subr.mxu0 0.0
  %1190 = vmatpush2.msra.mxu0 0.0
  %1191 = vmatprep.subr.mxu0 0.0
  %1192 = vmatpush2.msra.mxu0 0.0
  %1193 = vmatprep.mubr.f32.mxu0 0.0
  %1194 = vmatmul.mubr.f32.gmra.mxu0 %v1128
  %v1195 = vpop.f32.mrf.mxu0
  %v1196 = vadd.f32 1e-05, %v1195
  %v1197 = vpop.f32.mrf.mxu0
  %1198 = vdwg.mxu0
  %v1199 = vrsqrt.pop %v1196
  %v1200 = vmul.f32 %v1127, %v1199
  %vm1201 = vcmp.ge.f32.partialorder %v1200, 0.0
  %v1202 = vmul.f32 %v1200, 0.4
  %v1203 = vsel %vm1201, %v1200, %v1202
  %v1204 = vld [vmem:[%s3] sm:$0xff]
  %v1205 = vld [vmem:[%s3 + $0x8] sm:$0xff]
  %v1206 = vld [vmem:[%s3 + $0x10] sm:$0xff]
  %v1207 = vld [vmem:[%s3 + $0x18] sm:$0xff]
  %v1208 = vld [vmem:[%s3 + $0x20] sm:$0xff]
  %v1209 = vld [vmem:[%s3 + $0x28] sm:$0xff]
  %v1210 = vld [vmem:[%s3 + $0x30] sm:$0xff]
  %v1211 = vld [vmem:[%s3 + $0x38] sm:$0xff]
  %v1212 = vld [vmem:[%s3 + $0x40] sm:$0xff]
  %v1213 = vld [vmem:[%s3 + $0x48] sm:$0xff]
  %v1214 = vld [vmem:[%s3 + $0x50] sm:$0xff]
  %v1215 = vld [vmem:[%s3 + $0x58] sm:$0xff]
  %v1216 = vld [vmem:[%s3 + $0x60] sm:$0xff]
  %v1217 = vld [vmem:[%s3 + $0x68] sm:$0xff]
  %v1218 = vld [vmem:[%s3 + $0x70] sm:$0xff]
  %v1219 = vld [vmem:[%s3 + $0x78] sm:$0xff]
  %s1220 = scalar_lea.vmem %s3, 128
  %v1221 = vld [vmem:[%s1220] sm:$0xff]
  %v1222 = vld [vmem:[%s1220 + $0x8] sm:$0xff]
  %v1223 = vld [vmem:[%s1220 + $0x10] sm:$0xff]
  %v1224 = vld [vmem:[%s1220 + $0x18] sm:$0xff]
  %v1225 = vld [vmem:[%s1220 + $0x20] sm:$0xff]
  %v1226 = vld [vmem:[%s1220 + $0x28] sm:$0xff]
  %v1227 = vld [vmem:[%s1220 + $0x30] sm:$0xff]
  %v1228 = vld [vmem:[%s1220 + $0x38] sm:$0xff]
  %v1229 = vld [vmem:[%s1220 + $0x40] sm:$0xff]
  %v1230 = vld [vmem:[%s1220 + $0x48] sm:$0xff]
  %v1231 = vld [vmem:[%s1220 + $0x50] sm:$0xff]
  %v1232 = vld [vmem:[%s1220 + $0x58] sm:$0xff]
  %v1233 = vld [vmem:[%s1220 + $0x60] sm:$0xff]
  %v1234 = vld [vmem:[%s1220 + $0x68] sm:$0xff]
  %v1235 = vld [vmem:[%s1220 + $0x70] sm:$0xff]
  %v1236 = vld [vmem:[%s1220 + $0x78] sm:$0xff]
  %v1238 = vrot.slane %v1203, 1
  %1240 = vmatprep.subr.mxu0 0.0
  %1241 = vmatpush1.msra.mxu0 %v1236
  %1242 = vmatprep.subr.mxu0 0.0
  %1243 = vmatpush1.msra.mxu0 %v1235
  %1244 = vmatprep.subr.mxu0 0.0
  %1245 = vmatpush1.msra.mxu0 %v1234
  %1246 = vmatprep.subr.mxu0 0.0
  %1247 = vmatpush1.msra.mxu0 %v1233
  %1248 = vmatprep.subr.mxu0 0.0
  %1249 = vmatpush1.msra.mxu0 %v1232
  %1250 = vmatprep.subr.mxu0 0.0
  %1251 = vmatpush1.msra.mxu0 %v1231
  %1252 = vmatprep.subr.mxu0 0.0
  %1253 = vmatpush1.msra.mxu0 %v1230
  %1254 = vmatprep.subr.mxu0 0.0
  %1255 = vmatpush1.msra.mxu0 %v1229
  %1256 = vmatprep.subr.mxu0 0.0
  %1257 = vmatpush1.msra.mxu0 %v1228
  %1258 = vmatprep.subr.mxu0 0.0
  %1259 = vmatpush1.msra.mxu0 %v1227
  %1260 = vmatprep.subr.mxu0 0.0
  %1261 = vmatpush1.msra.mxu0 %v1226
  %1262 = vmatprep.subr.mxu0 0.0
  %1263 = vmatpush1.msra.mxu0 %v1225
  %1264 = vmatprep.subr.mxu0 0.0
  %1265 = vmatpush1.msra.mxu0 %v1224
  %1266 = vmatprep.subr.mxu0 0.0
  %1267 = vmatpush1.msra.mxu0 %v1223
  %1268 = vmatprep.subr.mxu0 0.0
  %1269 = vmatpush1.msra.mxu0 %v1222
  %1270 = vmatprep.subr.mxu0 0.0
  %1271 = vmatpush1.msra.mxu0 %v1221
  %1272 = vmatprep.subr.mxu0 0.0
  %1273 = vmatpush2.msra.mxu0 0.0
  %1274 = vmatprep.subr.mxu0 0.0
  %1275 = vmatpush2.msra.mxu0 0.0
  %1276 = vmatprep.subr.mxu0 0.0
  %1277 = vmatpush2.msra.mxu0 0.0
  %1278 = vmatprep.subr.mxu0 0.0
  %1279 = vmatpush2.msra.mxu0 0.0
  %1280 = vmatprep.subr.mxu0 0.0
  %1281 = vmatpush2.msra.mxu0 0.0
  %1282 = vmatprep.subr.mxu0 0.0
  %1283 = vmatpush2.msra.mxu0 0.0
  %1284 = vmatprep.subr.mxu0 0.0
  %1285 = vmatpush2.msra.mxu0 0.0
  %1286 = vmatprep.subr.mxu0 0.0
  %1287 = vmatpush2.msra.mxu0 0.0
  %1288 = vmatprep.subr.mxu0 0.0
  %1289 = vmatpush2.msra.mxu0 0.0
  %1290 = vmatprep.subr.mxu0 0.0
  %1291 = vmatpush2.msra.mxu0 0.0
  %1292 = vmatprep.subr.mxu0 0.0
  %1293 = vmatpush2.msra.mxu0 0.0
  %1294 = vmatprep.subr.mxu0 0.0
  %1295 = vmatpush2.msra.mxu0 0.0
  %1296 = vmatprep.subr.mxu0 0.0
  %1297 = vmatpush2.msra.mxu0 0.0
  %1298 = vmatprep.subr.mxu0 0.0
  %1299 = vmatpush2.msra.mxu0 0.0
  %1300 = vmatprep.subr.mxu0 0.0
  %1301 = vmatpush2.msra.mxu0 0.0
  %1302 = vmatprep.subr.mxu0 0.0
  %1303 = vmatpush2.msra.mxu0 0.0
  %1304 = vmatprep.mubr.f32.mxu0 0.0
  %1305 = vmatmul.mubr.f32.gmra.mxu0 %v1238
  %v1306 = vpop.f32.mrf.mxu0
  %v1307 = vadd.f32 0.0, %v1306
  %v1308 = vpop.f32.mrf.mxu0
  %1309 = vdwg.mxu0
  %1310 = vmatprep.subr.mxu0 0.0
  %1311 = vmatpush1.msra.mxu0 %v1219
  %1312 = vmatprep.subr.mxu0 0.0
  %1313 = vmatpush1.msra.mxu0 %v1218
  %1314 = vmatprep.subr.mxu0 0.0
  %1315 = vmatpush1.msra.mxu0 %v1217
  %1316 = vmatprep.subr.mxu0 0.0
  %1317 = vmatpush1.msra.mxu0 %v1216
  %1318 = vmatprep.subr.mxu0 0.0
  %1319 = vmatpush1.msra.mxu0 %v1215
  %1320 = vmatprep.subr.mxu0 0.0
  %1321 = vmatpush1.msra.mxu0 %v1214
  %1322 = vmatprep.subr.mxu0 0.0
  %1323 = vmatpush1.msra.mxu0 %v1213
  %1324 = vmatprep.subr.mxu0 0.0
  %1325 = vmatpush1.msra.mxu0 %v1212
  %1326 = vmatprep.subr.mxu0 0.0
  %1327 = vmatpush1.msra.mxu0 %v1211
  %1328 = vmatprep.subr.mxu0 0.0
  %1329 = vmatpush1.msra.mxu0 %v1210
  %1330 = vmatprep.subr.mxu0 0.0
  %1331 = vmatpush1.msra.mxu0 %v1209
  %1332 = vmatprep.subr.mxu0 0.0
  %1333 = vmatpush1.msra.mxu0 %v1208
  %1334 = vmatprep.subr.mxu0 0.0
  %1335 = vmatpush1.msra.mxu0 %v1207
  %1336 = vmatprep.subr.mxu0 0.0
  %1337 = vmatpush1.msra.mxu0 %v1206
  %1338 = vmatprep.subr.mxu0 0.0
  %1339 = vmatpush1.msra.mxu0 %v1205
  %1340 = vmatprep.subr.mxu0 0.0
  %1341 = vmatpush1.msra.mxu0 %v1204
  %1342 = vmatprep.subr.mxu0 0.0
  %1343 = vmatpush2.msra.mxu0 0.0
  %1344 = vmatprep.subr.mxu0 0.0
  %1345 = vmatpush2.msra.mxu0 0.0
  %1346 = vmatprep.subr.mxu0 0.0
  %1347 = vmatpush2.msra.mxu0 0.0
  %1348 = vmatprep.subr.mxu0 0.0
  %1349 = vmatpush2.msra.mxu0 0.0
  %1350 = vmatprep.subr.mxu0 0.0
  %1351 = vmatpush2.msra.mxu0 0.0
  %1352 = vmatprep.subr.mxu0 0.0
  %1353 = vmatpush2.msra.mxu0 0.0
  %1354 = vmatprep.subr.mxu0 0.0
  %1355 = vmatpush2.msra.mxu0 0.0
  %1356 = vmatprep.subr.mxu0 0.0
  %1357 = vmatpush2.msra.mxu0 0.0
  %1358 = vmatprep.subr.mxu0 0.0
  %1359 = vmatpush2.msra.mxu0 0.0
  %1360 = vmatprep.subr.mxu0 0.0
  %1361 = vmatpush2.msra.mxu0 0.0
  %1362 = vmatprep.subr.mxu0 0.0
  %1363 = vmatpush2.msra.mxu0 0.0
  %1364 = vmatprep.subr.mxu0 0.0
  %1365 = vmatpush2.msra.mxu0 0.0
  %1366 = vmatprep.subr.mxu0 0.0
  %1367 = vmatpush2.msra.mxu0 0.0
  %1368 = vmatprep.subr.mxu0 0.0
  %1369 = vmatpush2.msra.mxu0 0.0
  %1370 = vmatprep.subr.mxu0 0.0
  %1371 = vmatpush2.msra.mxu0 0.0
  %1372 = vmatprep.subr.mxu0 0.0
  %1373 = vmatpush2.msra.mxu0 0.0
  %1374 = vmatprep.mubr.f32.mxu0 0.0
  %1375 = vmatmul.mubr.f32.gmra.mxu0 %v1203
  %v1376 = vpop.f32.mrf.mxu0
  %v1377 = vadd.f32 %v1307, %v1376
  %v1378 = vpop.f32.mrf.mxu0
  %1379 = vdwg.mxu0
  %v1380 = vld [vmem:[#allocation3] sm:$0x1]
  %1382 = vset.pattern.permute.xlu0 0
  %1383 = vperm.xlu0 %1382, %v1380
  %v1384 = vpop.permute.xlu0 %1383
  %v1386 = vlaneseq
  %v1387 = vshrl.u32 %v1386, 7
  %v1388 = vsub.s32 0, %v1387
  %v1389 = vrot.slane %v1384, %v1388
  %v1390 = vadd.f32 %v1377, %v1389
  %1391 = vmatprep.subr.mxu0 0.0
  %1392 = vmatpush1.msra.mxu0 %v43
  %1393 = vmatprep.subr.mxu0 0.0
  %1394 = vmatpush1.msra.mxu0 %v42
  %1395 = vmatprep.subr.mxu0 0.0
  %1396 = vmatpush1.msra.mxu0 %v41
  %1397 = vmatprep.subr.mxu0 0.0
  %1398 = vmatpush1.msra.mxu0 %v40
  %1399 = vmatprep.subr.mxu0 0.0
  %1400 = vmatpush1.msra.mxu0 %v39
  %1401 = vmatprep.subr.mxu0 0.0
  %1402 = vmatpush1.msra.mxu0 %v38
  %1403 = vmatprep.subr.mxu0 0.0
  %1404 = vmatpush1.msra.mxu0 %v37
  %1405 = vmatprep.subr.mxu0 0.0
  %1406 = vmatpush1.msra.mxu0 %v36
  %1407 = vmatprep.subr.mxu0 0.0
  %1408 = vmatpush1.msra.mxu0 %v35
  %1409 = vmatprep.subr.mxu0 0.0
  %1410 = vmatpush1.msra.mxu0 %v34
  %1411 = vmatprep.subr.mxu0 0.0
  %1412 = vmatpush1.msra.mxu0 %v33
  %1413 = vmatprep.subr.mxu0 0.0
  %1414 = vmatpush1.msra.mxu0 %v32
  %1415 = vmatprep.subr.mxu0 0.0
  %1416 = vmatpush1.msra.mxu0 %v31
  %1417 = vmatprep.subr.mxu0 0.0
  %1418 = vmatpush1.msra.mxu0 %v30
  %1419 = vmatprep.subr.mxu0 0.0
  %1420 = vmatpush1.msra.mxu0 %v29
  %1421 = vmatprep.subr.mxu0 0.0
  %1422 = vmatpush1.msra.mxu0 %v28
  %1423 = vmatprep.subr.mxu0 0.0
  %1424 = vmatpush2.msra.mxu0 0.0
  %1425 = vmatprep.subr.mxu0 0.0
  %1426 = vmatpush2.msra.mxu0 0.0
  %1427 = vmatprep.subr.mxu0 0.0
  %1428 = vmatpush2.msra.mxu0 0.0
  %1429 = vmatprep.subr.mxu0 0.0
  %1430 = vmatpush2.msra.mxu0 0.0
  %1431 = vmatprep.subr.mxu0 0.0
  %1432 = vmatpush2.msra.mxu0 0.0
  %1433 = vmatprep.subr.mxu0 0.0
  %1434 = vmatpush2.msra.mxu0 0.0
  %1435 = vmatprep.subr.mxu0 0.0
  %1436 = vmatpush2.msra.mxu0 0.0
  %1437 = vmatprep.subr.mxu0 0.0
  %1438 = vmatpush2.msra.mxu0 0.0
  %1439 = vmatprep.subr.mxu0 0.0
  %1440 = vmatpush2.msra.mxu0 0.0
  %1441 = vmatprep.subr.mxu0 0.0
  %1442 = vmatpush2.msra.mxu0 0.0
  %1443 = vmatprep.subr.mxu0 0.0
  %1444 = vmatpush2.msra.mxu0 0.0
  %1445 = vmatprep.subr.mxu0 0.0
  %1446 = vmatpush2.msra.mxu0 0.0
  %1447 = vmatprep.subr.mxu0 0.0
  %1448 = vmatpush2.msra.mxu0 0.0
  %1449 = vmatprep.subr.mxu0 0.0
  %1450 = vmatpush2.msra.mxu0 0.0
  %1451 = vmatprep.subr.mxu0 0.0
  %1452 = vmatpush2.msra.mxu0 0.0
  %1453 = vmatprep.subr.mxu0 0.0
  %1454 = vmatpush2.msra.mxu0 0.0
  %1455 = vmatprep.mubr.f32.mxu0 0.0
  %1456 = vmatmul.mubr.f32.gmra.mxu0 %v1390
  %v1457 = vpop.f32.mrf.mxu0
  %v1458 = vadd.f32 0.0, %v1457
  %v1459 = vpop.f32.mrf.mxu0
  %1460 = vdwg.mxu0
  %v1461 = vsub.f32 %v1390, %v1458
  %v1462 = vmul.f32 %v1461, %v1461
  %1463 = vmatprep.subr.mxu0 0.0
  %1464 = vmatpush1.msra.mxu0 %v43
  %1465 = vmatprep.subr.mxu0 0.0
  %1466 = vmatpush1.msra.mxu0 %v42
  %1467 = vmatprep.subr.mxu0 0.0
  %1468 = vmatpush1.msra.mxu0 %v41
  %1469 = vmatprep.subr.mxu0 0.0
  %1470 = vmatpush1.msra.mxu0 %v40
  %1471 = vmatprep.subr.mxu0 0.0
  %1472 = vmatpush1.msra.mxu0 %v39
  %1473 = vmatprep.subr.mxu0 0.0
  %1474 = vmatpush1.msra.mxu0 %v38
  %1475 = vmatprep.subr.mxu0 0.0
  %1476 = vmatpush1.msra.mxu0 %v37
  %1477 = vmatprep.subr.mxu0 0.0
  %1478 = vmatpush1.msra.mxu0 %v36
  %1479 = vmatprep.subr.mxu0 0.0
  %1480 = vmatpush1.msra.mxu0 %v35
  %1481 = vmatprep.subr.mxu0 0.0
  %1482 = vmatpush1.msra.mxu0 %v34
  %1483 = vmatprep.subr.mxu0 0.0
  %1484 = vmatpush1.msra.mxu0 %v33
  %1485 = vmatprep.subr.mxu0 0.0
  %1486 = vmatpush1.msra.mxu0 %v32
  %1487 = vmatprep.subr.mxu0 0.0
  %1488 = vmatpush1.msra.mxu0 %v31
  %1489 = vmatprep.subr.mxu0 0.0
  %1490 = vmatpush1.msra.mxu0 %v30
  %1491 = vmatprep.subr.mxu0 0.0
  %1492 = vmatpush1.msra.mxu0 %v29
  %1493 = vmatprep.subr.mxu0 0.0
  %1494 = vmatpush1.msra.mxu0 %v28
  %1495 = vmatprep.subr.mxu0 0.0
  %1496 = vmatpush2.msra.mxu0 0.0
  %1497 = vmatprep.subr.mxu0 0.0
  %1498 = vmatpush2.msra.mxu0 0.0
  %1499 = vmatprep.subr.mxu0 0.0
  %1500 = vmatpush2.msra.mxu0 0.0
  %1501 = vmatprep.subr.mxu0 0.0
  %1502 = vmatpush2.msra.mxu0 0.0
  %1503 = vmatprep.subr.mxu0 0.0
  %1504 = vmatpush2.msra.mxu0 0.0
  %1505 = vmatprep.subr.mxu0 0.0
  %1506 = vmatpush2.msra.mxu0 0.0
  %1507 = vmatprep.subr.mxu0 0.0
  %1508 = vmatpush2.msra.mxu0 0.0
  %1509 = vmatprep.subr.mxu0 0.0
  %1510 = vmatpush2.msra.mxu0 0.0
  %1511 = vmatprep.subr.mxu0 0.0
  %1512 = vmatpush2.msra.mxu0 0.0
  %1513 = vmatprep.subr.mxu0 0.0
  %1514 = vmatpush2.msra.mxu0 0.0
  %1515 = vmatprep.subr.mxu0 0.0
  %1516 = vmatpush2.msra.mxu0 0.0
  %1517 = vmatprep.subr.mxu0 0.0
  %1518 = vmatpush2.msra.mxu0 0.0
  %1519 = vmatprep.subr.mxu0 0.0
  %1520 = vmatpush2.msra.mxu0 0.0
  %1521 = vmatprep.subr.mxu0 0.0
  %1522 = vmatpush2.msra.mxu0 0.0
  %1523 = vmatprep.subr.mxu0 0.0
  %1524 = vmatpush2.msra.mxu0 0.0
  %1525 = vmatprep.subr.mxu0 0.0
  %1526 = vmatpush2.msra.mxu0 0.0
  %1527 = vmatprep.mubr.f32.mxu0 0.0
  %1528 = vmatmul.mubr.f32.gmra.mxu0 %v1462
  %v1529 = vpop.f32.mrf.mxu0
  %v1530 = vadd.f32 1e-05, %v1529
  %v1531 = vpop.f32.mrf.mxu0
  %1532 = vdwg.mxu0
  %v1533 = vrsqrt.pop %v1530
  %v1534 = vmul.f32 %v1461, %v1533
  %vm1535 = vcmp.ge.f32.partialorder %v1534, 0.0
  %v1536 = vmul.f32 %v1534, 0.4
  %v1537 = vsel %vm1535, %v1534, %v1536
  %v1538 = vlaneseq
  %v1539 = vshrl.u32 %v1538, 7
  %v1540 = vsub.s32 0, %v1539
  %v1541 = vrot.slane %v1537, %v1540
  %v1542 = vadd.f32 %v44, %v1541
  %v1543 = vadd.f32 %v45, %v1541
  %v1544 = vadd.f32 %v46, %v1541
  %v1545 = vadd.f32 %v47, %v1541
  %v1546 = vadd.f32 %v48, %v1541
  %v1547 = vadd.f32 %v49, %v1541
  %v1548 = vadd.f32 %v50, %v1541
  %v1549 = vadd.f32 %v51, %v1541
  %v1550 = vmax.f32 %v1542, 0.0
  %v1551 = vmax.f32 %v1543, 0.0
  %v1552 = vmax.f32 %v1544, 0.0
  %v1553 = vmax.f32 %v1545, 0.0
  %v1554 = vmax.f32 %v1546, 0.0
  %v1555 = vmax.f32 %v1547, 0.0
  %v1556 = vmax.f32 %v1548, 0.0
  %v1557 = vmax.f32 %v1549, 0.0
  %1558 = vst [vmem:[%s7] sm:$0xff] %v1550
  %1559 = vst [vmem:[%s7 + $0x8] sm:$0xff] %v1551
  %1560 = vst [vmem:[%s7 + $0x10] sm:$0xff] %v1552
  %1561 = vst [vmem:[%s7 + $0x18] sm:$0xff] %v1553
  %1562 = vst [vmem:[%s7 + $0x20] sm:$0xff] %v1554
  %1563 = vst [vmem:[%s7 + $0x28] sm:$0xff] %v1555
  %1564 = vst [vmem:[%s7 + $0x30] sm:$0xff] %v1556
  %1565 = vst [vmem:[%s7 + $0x38] sm:$0xff] %v1557
  // Predicated region
  $region30: #{resnet1d_block_encode.1} parent=0 // pred_check
    _
  $region31: #{resnet1d_block_encode.1} parent=0 // pred_check_branch
    %1567 = sbr.rel (0) target = $region33
  $region32: #{resnet1d_block_encode.1} parent=0 // pred_region
    _
  $region33: #{resnet1d_block_encode.1} parent=0 // pred_fallthru
    _
  // Predicated region
  $region34: #{resnet1d_block_encode.1} parent=0 // pred_check
    _
  $region35: #{resnet1d_block_encode.1} parent=0 // pred_check_branch
    %1569 = sbr.rel (0) target = $region37
  $region36: #{resnet1d_block_encode.1} parent=0 // pred_region
    _
  $region37: #{resnet1d_block_encode.1} parent=0 // pred_fallthru
    _

</llo_original>
